<compile_context>
chip_gen: v5e
topology: v5e:2x2
jax: 0.10.0
libtpu: 0.0.40
codegen_flags: <defaults>
</compile_context>

<pallas_src>
import math
import functools

import jax
import jax.numpy as jnp
from jax.experimental import pallas as pl
from jax.experimental.pallas import tpu as pltpu

EMBED = 64
HEADS = 8
HEAD_DIM = EMBED // HEADS
SEQ = 8
BATCH = 2
HIDDEN = 4 * EMBED
EPS = 1e-5  # torch.nn.LayerNorm default


def _layernorm(x, gamma, beta):
    mu = jnp.mean(x, axis=-1, keepdims=True)
    xc = x - mu
    var = jnp.mean(xc * xc, axis=-1, keepdims=True)
    return xc * jax.lax.rsqrt(var + EPS) * gamma + beta


def _transformer_kernel(*refs, use_mask, n_batch, seq):
    if use_mask:
        (qkv_ref, qres_ref, bias_ref, wqkv_ref, wo_ref, w1_ref, w2_ref,
         vec_ref, out_ref) = refs
    else:
        (qkv_ref, qres_ref, wqkv_ref, wo_ref, w1_ref, w2_ref,
         vec_ref, out_ref) = refs
        bias_ref = None

    N, L = n_batch, seq
    H, D, E = HEADS, HEAD_DIM, EMBED
    M = N * L
    B = H * N     # heads folded into the batch dim

    # ---- fused Q/K/V projections: one batched (3x) matmul against the raw
    #      per-head (D,D) weights (softmax scale pre-folded into the Q weight).
    proj = jnp.einsum('smd,sde->sme', qkv_ref[...], wqkv_ref[...],
                      preferred_element_type=jnp.float32)        # (3, H*N*L, D) f32
    q_hm = proj[0].reshape(B, L, D).astype(jnp.bfloat16)          # (H*N, L, D)
    k_hm = proj[1].reshape(B, L, D).astype(jnp.bfloat16)
    v_hm = proj[2].reshape(B, L, D).astype(jnp.bfloat16)

    # ---- attention: ONE batched energy einsum, ONE softmax, ONE PV einsum.
    energy = jnp.einsum('bqd,bkd->bqk', q_hm, k_hm,
                        preferred_element_type=jnp.float32)       # (H*N, L, L)
    if use_mask:
        # additive 0 / -1e20 bias applied once to the whole energy tensor
        energy = (energy.reshape(H, N, L, L) + bias_ref[...]).reshape(B, L, L)

    m = jnp.max(energy, axis=-1, keepdims=True)
    p = jnp.exp(energy - m)
    s = jnp.sum(p, axis=-1, keepdims=True)
    attn = p * pl.reciprocal(s, approx=True)                      # f32 softmax

    out_hm = jnp.einsum('bqk,bkd->bqd', attn.astype(jnp.bfloat16), v_hm,
                        preferred_element_type=jnp.float32)       # (H*N, L, D) f32

    # ---- fc_out with the head-merge folded in: wo.T's per-head (D,E) slices
    #      scatter each head into its lane range, so summing the head-batched
    #      product over h IS concat(heads) @ wo.T (no transpose / concat).
    fc = jnp.sum(
        jnp.einsum('hmd,hde->hme',
                   out_hm.reshape(H, M, D).astype(jnp.bfloat16),
                   wo_ref[...], preferred_element_type=jnp.float32),
        axis=0)                                                   # (M, E) f32

    # Packed bias / LayerNorm-parameter slab (single DMA).
    vec = vec_ref[...]                                            # (8, 4E) f32
    bo  = vec[0:1, :E]
    b1  = vec[1:2, :]
    b2  = vec[2:3, :E]
    g1  = vec[3:4, :E]
    be1 = vec[4:5, :E]
    g2  = vec[5:6, :E]
    be2 = vec[6:7, :E]

    # residual + LayerNorm1 (f32; exact f32 residual comes in separately)
    x1 = _layernorm(fc + bo + qres_ref[...], g1, be1)

    # feed-forward: Linear(E,4E) -> ReLU -> Linear(4E,E)
    h1 = jnp.maximum(jnp.dot(x1.astype(jnp.bfloat16), w1_ref[...],
                             preferred_element_type=jnp.float32) + b1, 0.0)
    h2 = jnp.dot(h1.astype(jnp.bfloat16), w2_ref[...],
                 preferred_element_type=jnp.float32) + b2

    # residual + LayerNorm2 (f32).  Output is (16, 64); padding it to 128 lanes
    # for an unmasked vst is a wash at this size (review item 6) — skipped.
    out_ref[...] = _layernorm(h2 + x1, g2, be2)


def prepare_params(p):
    """One-time weight packing (hoisted out of the per-call path)."""
    inv_sqrt_e = 1.0 / math.sqrt(EMBED)   # PyTorch divides logits by embed_size**0.5
    # Raw per-head projection weights, batched along a leading dim of 3 — no
    # zero-padded block-diagonal matrices are fed to the MXU.
    w_qkv = jnp.stack([p["wq"].T * inv_sqrt_e,     # scale folded into Q projection
                       p["wk"].T,
                       p["wv"].T]).astype(jnp.bfloat16)            # (3, D, D)

    # fc_out weight split per head: wo.T reshaped to (H, D, E).
    wo_heads = p["wo"].T.reshape(HEADS, HEAD_DIM, EMBED).astype(jnp.bfloat16)

    w1T = p["w1"].T.astype(jnp.bfloat16)                           # (E, 4E)
    w2T = p["w2"].T.astype(jnp.bfloat16)                           # (4E, E)

    vecs = jnp.zeros((8, HIDDEN), jnp.float32)
    vecs = vecs.at[0, :EMBED].set(p["bo"])
    vecs = vecs.at[1, :].set(p["b1"])
    vecs = vecs.at[2, :EMBED].set(p["b2"])
    vecs = vecs.at[3, :EMBED].set(p["g1"])
    vecs = vecs.at[4, :EMBED].set(p["be1"])
    vecs = vecs.at[5, :EMBED].set(p["g2"])
    vecs = vecs.at[6, :EMBED].set(p["be2"])
    return {"w_qkv": w_qkv, "wo_heads": wo_heads, "w1T": w1T, "w2T": w2T,
            "vecs": vecs}


def _full_spec(shape):
    nd = len(shape)
    return pl.BlockSpec(shape, lambda i, _nd=nd: (0,) * _nd)


def _transformer_block_fn(value, key, query, mask, prepped):
    """value/key/query: (N, L, E) float32; mask: None or broadcastable to (N, H, L, L)."""
    N, L, E = query.shape
    H, D = HEADS, HEAD_DIM
    M = N * L

    def to_head_major(x):
        # (N, L, E) -> (H, N, L, D) -> (H*N*L, D): XLA-side layout prep so the
        # kernel needs no in-kernel transposes (heads become the batch dim).
        return x.reshape(N, L, H, D).transpose(2, 0, 1, 3).reshape(H * N * L, D)

    qkv = jnp.stack([to_head_major(query), to_head_major(key),
                     to_head_major(value)]).astype(jnp.bfloat16)   # (3, H*N*L, D) bf16
    q_res = query.reshape(M, E).astype(jnp.float32)                # exact f32 residual

    args = [qkv, q_res]
    in_specs = [_full_spec(qkv.shape), _full_spec(q_res.shape)]

    use_mask = mask is not None
    if use_mask:
        mask = jnp.asarray(mask)
        # additive bias (0 / -1e20); equivalent to masked_fill(mask==0, -1e20)
        bias = jnp.where(mask == 0, jnp.float32(-1e20), jnp.float32(0.0))
        if bias.ndim >= 4 and bias.shape[0] > 1:
            bias = jnp.broadcast_to(bias, (N, H, L, L))            # real per-batch mask
        else:
            bias = bias.reshape((1,) * (4 - bias.ndim) + bias.shape)
            bias = jnp.broadcast_to(bias, (1, H, L, L))            # never expand over batch in HBM
        bias = bias.transpose(1, 0, 2, 3)                          # (H, 1|N, L, L) head-major
        args.append(bias)
        in_specs.append(_full_spec(bias.shape))

    for name in ("w_qkv", "wo_heads", "w1T", "w2T", "vecs"):
        w = prepped[name]
        args.append(w)
        in_specs.append(_full_spec(w.shape))

    kernel = functools.partial(_transformer_kernel, use_mask=use_mask,
                               n_batch=N, seq=L)

    out = pl.pallas_call(
        kernel,
        out_shape=jax.ShapeDtypeStruct((M, E), jnp.float32),
        grid=(1,),   # single resident step; everything fits in VMEM on v5e/v6e/v7x
        in_specs=in_specs,
        out_specs=_full_spec((M, E)),
        compiler_params=pltpu.CompilerParams(dimension_semantics=("arbitrary",)),
    )(*args)
    return out.reshape(N, L, E)


transformer_block = jax.jit(_transformer_block_fn)


def reference(value, key, query, mask, p):
    """Pure-JAX (f32) transcription of the PyTorch forward for checking."""
    N, L, E = query.shape
    v = value.reshape(N, L, HEADS, HEAD_DIM) @ p["wv"].T
    k = key.reshape(N, L, HEADS, HEAD_DIM) @ p["wk"].T
    q = query.reshape(N, L, HEADS, HEAD_DIM) @ p["wq"].T
    energy = jnp.einsum("nqhd,nkhd->nhqk", q, k)
    if mask is not None:
        energy = jnp.where(mask == 0, jnp.float32(-1e20), energy)
    attn = jax.nn.softmax(energy / math.sqrt(E), axis=3)
    out = jnp.einsum("nhql,nlhd->nqhd", attn, v).reshape(N, L, E)
    out = out @ p["wo"].T + p["bo"]
    x1 = _layernorm(out + query, p["g1"], p["be1"])
    ff = jnp.maximum(x1 @ p["w1"].T + p["b1"], 0.0) @ p["w2"].T + p["b2"]
    return _layernorm(ff + x1, p["g2"], p["be2"])


def init_params(rng):
    ks = jax.random.split(rng, 8)

    def lin(k, out_f, in_f):
        bound = 1.0 / math.sqrt(in_f)
        return jax.random.uniform(k, (out_f, in_f), jnp.float32, -bound, bound)

    return {
        "wq": lin(ks[0], HEAD_DIM, HEAD_DIM),
        "wk": lin(ks[1], HEAD_DIM, HEAD_DIM),
        "wv": lin(ks[2], HEAD_DIM, HEAD_DIM),
        "wo": lin(ks[3], EMBED, EMBED),
        "bo": jax.random.uniform(ks[4], (EMBED,), jnp.float32, -0.1, 0.1),
        "w1": lin(ks[5], HIDDEN, EMBED),
        "b1": jax.random.uniform(ks[6], (HIDDEN,), jnp.float32, -0.1, 0.1),
        "w2": lin(ks[7], EMBED, HIDDEN),
        "b2": jnp.zeros((EMBED,), jnp.float32),
        # LayerNorm defaults (weight=1, bias=0), matching nn.LayerNorm init
        "g1": jnp.ones((EMBED,), jnp.float32),
        "be1": jnp.zeros((EMBED,), jnp.float32),
        "g2": jnp.ones((EMBED,), jnp.float32),
        "be2": jnp.zeros((EMBED,), jnp.float32),
    }


if __name__ == "__main__":
    root = jax.random.PRNGKey(0)
    k_val, k_key, k_qry, k_par = jax.random.split(root, 4)

    value = jax.random.normal(k_val, (BATCH, SEQ, EMBED), jnp.float32)
    key_ = jax.random.normal(k_key, (BATCH, SEQ, EMBED), jnp.float32)
    query = jax.random.normal(k_qry, (BATCH, SEQ, EMBED), jnp.float32)
    params = init_params(k_par)
    prepped = prepare_params(params)

    # Tolerance is 3e-2 because the kernel uses bf16 matmul operands (f32
    # accumulation, f32 softmax/LayerNorm); the reference is pure f32.
    TOL = 3e-2

    # mask = None path (same semantics as PyTorch forward with mask=None)
    out = transformer_block(value, key_, query, None, prepped)
    jax.block_until_ready(out)
    ref = reference(value, key_, query, None, params)
    assert jnp.allclose(out, ref, atol=TOL, rtol=TOL), "mismatch (no mask)"

    # causal-mask path (exercises masked_fill(mask == 0, -1e20))
    causal = jnp.tril(jnp.ones((SEQ, SEQ), jnp.float32))[None, None]  # (1,1,L,L)
    out_m = transformer_block(value, key_, query, causal, prepped)
    jax.block_until_ready(out_m)
    ref_m = reference(value, key_, query, causal, params)
    assert jnp.allclose(out_m, ref_m, atol=TOL, rtol=TOL), "mismatch (mask)"

    print("KERNEL_OK")
</pallas_src>

<mosaic_0001>
module attributes {stable_mosaic.version = 11 : i64} {
  func.func @_transformer_kernel(%arg0: i32, %arg1: memref<3x128x8xbf16, #tpu.memory_space<vmem>>, %arg2: memref<16x64xf32, #tpu.memory_space<vmem>>, %arg3: memref<3x8x8xbf16, #tpu.memory_space<vmem>>, %arg4: memref<8x8x64xbf16, #tpu.memory_space<vmem>>, %arg5: memref<64x256xbf16, #tpu.memory_space<vmem>>, %arg6: memref<256x64xbf16, #tpu.memory_space<vmem>>, %arg7: memref<8x256xf32, #tpu.memory_space<vmem>>, %arg8: memref<16x64xf32, #tpu.memory_space<vmem>>) attributes {dimension_semantics = [#tpu.dimension_semantics<arbitrary>], iteration_bounds = array<i64: 1>, scalar_prefetch = 0 : i64, scratch_operands = 0 : i64, tpu.core_type = #tpu.core_type<tc>, window_params = [{pipeline_mode = #tpu.pipeline_mode<synchronous>, transform_indices = @transform_0, window_bounds = array<i64: 3, 128, 8>}, {pipeline_mode = #tpu.pipeline_mode<synchronous>, transform_indices = @transform_1, window_bounds = array<i64: 16, 64>}, {pipeline_mode = #tpu.pipeline_mode<synchronous>, transform_indices = @transform_2, window_bounds = array<i64: 3, 8, 8>}, {pipeline_mode = #tpu.pipeline_mode<synchronous>, transform_indices = @transform_3, window_bounds = array<i64: 8, 8, 64>}, {pipeline_mode = #tpu.pipeline_mode<synchronous>, transform_indices = @transform_4, window_bounds = array<i64: 64, 256>}, {pipeline_mode = #tpu.pipeline_mode<synchronous>, transform_indices = @transform_5, window_bounds = array<i64: 256, 64>}, {pipeline_mode = #tpu.pipeline_mode<synchronous>, transform_indices = @transform_6, window_bounds = array<i64: 8, 256>}, {pipeline_mode = #tpu.pipeline_mode<synchronous>, transform_indices = @transform_7, window_bounds = array<i64: 16, 64>}]} {
    %c0 = arith.constant 0 : index
    %c0_0 = arith.constant 0 : index
    %c0_1 = arith.constant 0 : index
    %0 = vector.load %arg1[%c0, %c0_0, %c0_1] : memref<3x128x8xbf16, #tpu.memory_space<vmem>>, vector<3x128x8xbf16>
    %c0_2 = arith.constant 0 : index
    %c0_3 = arith.constant 0 : index
    %c0_4 = arith.constant 0 : index
    %1 = vector.load %arg3[%c0_2, %c0_3, %c0_4] : memref<3x8x8xbf16, #tpu.memory_space<vmem>>, vector<3x8x8xbf16>
    "tpu.trace_start"() <{level = 10 : i32, message = "smd,sde->sme"}> : () -> ()
    %cst = arith.constant dense<0.000000e+00> : vector<3x128x8xf32>
    %2 = tpu.matmul %0, %1, %cst {dimension_numbers = #tpu.dot_dimension_numbers<[2], [1], [1], [2], [0, 0, 0, 1, 1, 2], [0], [0]>} : vector<3x128x8xbf16>, vector<3x8x8xbf16>, vector<3x128x8xf32> -> vector<3x128x8xf32>
    "tpu.trace_stop"() : () -> ()
    %3 = vector.extract_strided_slice %2 {offsets = [0, 0, 0], sizes = [1, 128, 8], strides = [1, 1, 1]} : vector<3x128x8xf32> to vector<1x128x8xf32>
    %4 = vector.shape_cast %3 : vector<1x128x8xf32> to vector<128x8xf32>
    %5 = vector.shape_cast %4 : vector<128x8xf32> to vector<16x8x8xf32>
    %6 = arith.truncf %5 : vector<16x8x8xf32> to vector<16x8x8xbf16>
    %7 = vector.extract_strided_slice %2 {offsets = [1, 0, 0], sizes = [1, 128, 8], strides = [1, 1, 1]} : vector<3x128x8xf32> to vector<1x128x8xf32>
    %8 = vector.shape_cast %7 : vector<1x128x8xf32> to vector<128x8xf32>
    %9 = vector.shape_cast %8 : vector<128x8xf32> to vector<16x8x8xf32>
    %10 = arith.truncf %9 : vector<16x8x8xf32> to vector<16x8x8xbf16>
    %11 = vector.extract_strided_slice %2 {offsets = [2, 0, 0], sizes = [1, 128, 8], strides = [1, 1, 1]} : vector<3x128x8xf32> to vector<1x128x8xf32>
    %12 = vector.shape_cast %11 : vector<1x128x8xf32> to vector<128x8xf32>
    %13 = vector.shape_cast %12 : vector<128x8xf32> to vector<16x8x8xf32>
    %14 = arith.truncf %13 : vector<16x8x8xf32> to vector<16x8x8xbf16>
    "tpu.trace_start"() <{level = 10 : i32, message = "bqd,bkd->bqk"}> : () -> ()
    %cst_5 = arith.constant dense<0.000000e+00> : vector<16x8x8xf32>
    %15 = tpu.matmul %6, %10, %cst_5 {dimension_numbers = #tpu.dot_dimension_numbers<[2], [2], [1], [1], [0, 0, 0, 1, 1, 1], [0], [0]>} : vector<16x8x8xbf16>, vector<16x8x8xbf16>, vector<16x8x8xf32> -> vector<16x8x8xf32>
    "tpu.trace_stop"() : () -> ()
    %cst_6 = arith.constant dense<0xFF800000> : vector<16x8xf32>
    %16 = vector.multi_reduction <maximumf>, %15, %cst_6 [2] : vector<16x8x8xf32> to vector<16x8xf32>
    %17 = vector.shape_cast %16 : vector<16x8xf32> to vector<16x8x1xf32>
    %18 = vector.broadcast %17 : vector<16x8x1xf32> to vector<16x8x8xf32>
    %19 = arith.subf %15, %18 : vector<16x8x8xf32>
    %20 = math.exp %19 : vector<16x8x8xf32>
    %cst_7 = arith.constant dense<0.000000e+00> : vector<16x8xf32>
    %21 = vector.multi_reduction <add>, %20, %cst_7 [2] : vector<16x8x8xf32> to vector<16x8xf32>
    %22 = vector.shape_cast %21 : vector<16x8xf32> to vector<16x8x1xf32>
    %23 = tpu.reciprocal %22 {approx = true} : vector<16x8x1xf32> -> vector<16x8x1xf32>
    %24 = vector.broadcast %23 : vector<16x8x1xf32> to vector<16x8x8xf32>
    %25 = arith.mulf %20, %24 : vector<16x8x8xf32>
    %26 = arith.truncf %25 : vector<16x8x8xf32> to vector<16x8x8xbf16>
    "tpu.trace_start"() <{level = 10 : i32, message = "bqk,bkd->bqd"}> : () -> ()
    %cst_8 = arith.constant dense<0.000000e+00> : vector<16x8x8xf32>
    %27 = tpu.matmul %26, %14, %cst_8 {dimension_numbers = #tpu.dot_dimension_numbers<[2], [1], [1], [2], [0, 0, 0, 1, 1, 2], [0], [0]>} : vector<16x8x8xbf16>, vector<16x8x8xbf16>, vector<16x8x8xf32> -> vector<16x8x8xf32>
    "tpu.trace_stop"() : () -> ()
    %28 = vector.shape_cast %27 : vector<16x8x8xf32> to vector<8x16x8xf32>
    %29 = arith.truncf %28 : vector<8x16x8xf32> to vector<8x16x8xbf16>
    %c0_9 = arith.constant 0 : index
    %c0_10 = arith.constant 0 : index
    %c0_11 = arith.constant 0 : index
    %30 = vector.load %arg4[%c0_9, %c0_10, %c0_11] : memref<8x8x64xbf16, #tpu.memory_space<vmem>>, vector<8x8x64xbf16>
    "tpu.trace_start"() <{level = 10 : i32, message = "hmd,hde->hme"}> : () -> ()
    %cst_12 = arith.constant dense<0.000000e+00> : vector<8x16x64xf32>
    %31 = tpu.matmul %29, %30, %cst_12 {dimension_numbers = #tpu.dot_dimension_numbers<[2], [1], [1], [2], [0, 0, 0, 1, 1, 2], [0], [0]>} : vector<8x16x8xbf16>, vector<8x8x64xbf16>, vector<8x16x64xf32> -> vector<8x16x64xf32>
    "tpu.trace_stop"() : () -> ()
    %cst_13 = arith.constant dense<0.000000e+00> : vector<16x64xf32>
    %32 = vector.multi_reduction <add>, %31, %cst_13 [0] : vector<8x16x64xf32> to vector<16x64xf32>
    %c0_14 = arith.constant 0 : index
    %c0_15 = arith.constant 0 : index
    %33 = vector.load %arg7[%c0_14, %c0_15] : memref<8x256xf32, #tpu.memory_space<vmem>>, vector<8x256xf32>
    %34 = vector.extract_strided_slice %33 {offsets = [0, 0], sizes = [1, 64], strides = [1, 1]} : vector<8x256xf32> to vector<1x64xf32>
    %35 = vector.extract_strided_slice %33 {offsets = [1, 0], sizes = [1, 256], strides = [1, 1]} : vector<8x256xf32> to vector<1x256xf32>
    %36 = vector.extract_strided_slice %33 {offsets = [2, 0], sizes = [1, 64], strides = [1, 1]} : vector<8x256xf32> to vector<1x64xf32>
    %37 = vector.extract_strided_slice %33 {offsets = [3, 0], sizes = [1, 64], strides = [1, 1]} : vector<8x256xf32> to vector<1x64xf32>
    %38 = vector.extract_strided_slice %33 {offsets = [4, 0], sizes = [1, 64], strides = [1, 1]} : vector<8x256xf32> to vector<1x64xf32>
    %39 = vector.extract_strided_slice %33 {offsets = [5, 0], sizes = [1, 64], strides = [1, 1]} : vector<8x256xf32> to vector<1x64xf32>
    %40 = vector.extract_strided_slice %33 {offsets = [6, 0], sizes = [1, 64], strides = [1, 1]} : vector<8x256xf32> to vector<1x64xf32>
    %41 = vector.broadcast %34 : vector<1x64xf32> to vector<16x64xf32>
    %42 = arith.addf %32, %41 : vector<16x64xf32>
    %c0_16 = arith.constant 0 : index
    %c0_17 = arith.constant 0 : index
    %43 = vector.load %arg2[%c0_16, %c0_17] : memref<16x64xf32, #tpu.memory_space<vmem>>, vector<16x64xf32>
    %44 = arith.addf %42, %43 : vector<16x64xf32>
    %cst_18 = arith.constant dense<0.000000e+00> : vector<16xf32>
    %45 = vector.multi_reduction <add>, %44, %cst_18 [1] : vector<16x64xf32> to vector<16xf32>
    %46 = vector.shape_cast %45 : vector<16xf32> to vector<16x1xf32>
    %cst_19 = arith.constant 6.400000e+01 : f32
    %47 = vector.broadcast %cst_19 : f32 to vector<16x1xf32>
    %48 = arith.divf %46, %47 : vector<16x1xf32>
    %49 = vector.broadcast %48 : vector<16x1xf32> to vector<16x64xf32>
    %50 = arith.subf %44, %49 : vector<16x64xf32>
    %51 = arith.mulf %50, %50 : vector<16x64xf32>
    %cst_20 = arith.constant dense<0.000000e+00> : vector<16xf32>
    %52 = vector.multi_reduction <add>, %51, %cst_20 [1] : vector<16x64xf32> to vector<16xf32>
    %53 = vector.shape_cast %52 : vector<16xf32> to vector<16x1xf32>
    %cst_21 = arith.constant 6.400000e+01 : f32
    %54 = vector.broadcast %cst_21 : f32 to vector<16x1xf32>
    %55 = arith.divf %53, %54 : vector<16x1xf32>
    %cst_22 = arith.constant 9.99999974E-6 : f32
    %56 = vector.broadcast %cst_22 : f32 to vector<16x1xf32>
    %57 = arith.addf %55, %56 : vector<16x1xf32>
    %58 = math.rsqrt %57 : vector<16x1xf32>
    %59 = vector.broadcast %58 : vector<16x1xf32> to vector<16x64xf32>
    %60 = arith.mulf %50, %59 : vector<16x64xf32>
    %61 = vector.broadcast %37 : vector<1x64xf32> to vector<16x64xf32>
    %62 = arith.mulf %60, %61 : vector<16x64xf32>
    %63 = vector.broadcast %38 : vector<1x64xf32> to vector<16x64xf32>
    %64 = arith.addf %62, %63 : vector<16x64xf32>
    %65 = arith.truncf %64 : vector<16x64xf32> to vector<16x64xbf16>
    %c0_23 = arith.constant 0 : index
    %c0_24 = arith.constant 0 : index
    %66 = vector.load %arg5[%c0_23, %c0_24] : memref<64x256xbf16, #tpu.memory_space<vmem>>, vector<64x256xbf16>
    %cst_25 = arith.constant dense<0.000000e+00> : vector<16x256xf32>
    %67 = tpu.matmul %65, %66, %cst_25 {dimension_numbers = #tpu.dot_dimension_numbers<[1], [0], [0], [1], [0, 0, 1, 1], [], []>} : vector<16x64xbf16>, vector<64x256xbf16>, vector<16x256xf32> -> vector<16x256xf32>
    %68 = vector.broadcast %35 : vector<1x256xf32> to vector<16x256xf32>
    %69 = arith.addf %67, %68 : vector<16x256xf32>
    %cst_26 = arith.constant 0.000000e+00 : f32
    %70 = vector.broadcast %cst_26 : f32 to vector<16x256xf32>
    %71 = arith.maximumf %69, %70 : vector<16x256xf32>
    %72 = arith.truncf %71 : vector<16x256xf32> to vector<16x256xbf16>
    %c0_27 = arith.constant 0 : index
    %c0_28 = arith.constant 0 : index
    %73 = vector.load %arg6[%c0_27, %c0_28] : memref<256x64xbf16, #tpu.memory_space<vmem>>, vector<256x64xbf16>
    %cst_29 = arith.constant dense<0.000000e+00> : vector<16x64xf32>
    %74 = tpu.matmul %72, %73, %cst_29 {dimension_numbers = #tpu.dot_dimension_numbers<[1], [0], [0], [1], [0, 0, 1, 1], [], []>} : vector<16x256xbf16>, vector<256x64xbf16>, vector<16x64xf32> -> vector<16x64xf32>
    %75 = vector.broadcast %36 : vector<1x64xf32> to vector<16x64xf32>
    %76 = arith.addf %74, %75 : vector<16x64xf32>
    %77 = arith.addf %76, %64 : vector<16x64xf32>
    %cst_30 = arith.constant dense<0.000000e+00> : vector<16xf32>
    %78 = vector.multi_reduction <add>, %77, %cst_30 [1] : vector<16x64xf32> to vector<16xf32>
    %79 = vector.shape_cast %78 : vector<16xf32> to vector<16x1xf32>
    %cst_31 = arith.constant 6.400000e+01 : f32
    %80 = vector.broadcast %cst_31 : f32 to vector<16x1xf32>
    %81 = arith.divf %79, %80 : vector<16x1xf32>
    %82 = vector.broadcast %81 : vector<16x1xf32> to vector<16x64xf32>
    %83 = arith.subf %77, %82 : vector<16x64xf32>
    %84 = arith.mulf %83, %83 : vector<16x64xf32>
    %cst_32 = arith.constant dense<0.000000e+00> : vector<16xf32>
    %85 = vector.multi_reduction <add>, %84, %cst_32 [1] : vector<16x64xf32> to vector<16xf32>
    %86 = vector.shape_cast %85 : vector<16xf32> to vector<16x1xf32>
    %cst_33 = arith.constant 6.400000e+01 : f32
    %87 = vector.broadcast %cst_33 : f32 to vector<16x1xf32>
    %88 = arith.divf %86, %87 : vector<16x1xf32>
    %cst_34 = arith.constant 9.99999974E-6 : f32
    %89 = vector.broadcast %cst_34 : f32 to vector<16x1xf32>
    %90 = arith.addf %88, %89 : vector<16x1xf32>
    %91 = math.rsqrt %90 : vector<16x1xf32>
    %92 = vector.broadcast %91 : vector<16x1xf32> to vector<16x64xf32>
    %93 = arith.mulf %83, %92 : vector<16x64xf32>
    %94 = vector.broadcast %39 : vector<1x64xf32> to vector<16x64xf32>
    %95 = arith.mulf %93, %94 : vector<16x64xf32>
    %96 = vector.broadcast %40 : vector<1x64xf32> to vector<16x64xf32>
    %97 = arith.addf %95, %96 : vector<16x64xf32>
    %c0_35 = arith.constant 0 : index
    %c0_36 = arith.constant 0 : index
    %98 = vector.load %arg8[%c0_35, %c0_36] : memref<16x64xf32, #tpu.memory_space<vmem>>, vector<16x64xf32>
    tpu.vector_store %arg8[%c0_35, %c0_36], %97 {strides = array<i32>} : memref<16x64xf32, #tpu.memory_space<vmem>>, vector<16x64xf32>,
    return
  }
  func.func @transform_0(%arg0: i32) -> (i32, i32, i32) {
    %c0_i32 = arith.constant 0 : i32
    %c0_i32_0 = arith.constant 0 : i32
    %c0_i32_1 = arith.constant 0 : i32
    %c0_i32_2 = arith.constant 0 : i32
    return %c0_i32, %c0_i32_0, %c0_i32_1 : i32, i32, i32
  }
  func.func @transform_1(%arg0: i32) -> (i32, i32) {
    %c0_i32 = arith.constant 0 : i32
    %c0_i32_0 = arith.constant 0 : i32
    %c0_i32_1 = arith.constant 0 : i32
    return %c0_i32, %c0_i32_0 : i32, i32
  }
  func.func @transform_2(%arg0: i32) -> (i32, i32, i32) {
    %c0_i32 = arith.constant 0 : i32
    %c0_i32_0 = arith.constant 0 : i32
    %c0_i32_1 = arith.constant 0 : i32
    %c0_i32_2 = arith.constant 0 : i32
    return %c0_i32, %c0_i32_0, %c0_i32_1 : i32, i32, i32
  }
  func.func @transform_3(%arg0: i32) -> (i32, i32, i32) {
    %c0_i32 = arith.constant 0 : i32
    %c0_i32_0 = arith.constant 0 : i32
    %c0_i32_1 = arith.constant 0 : i32
    %c0_i32_2 = arith.constant 0 : i32
    return %c0_i32, %c0_i32_0, %c0_i32_1 : i32, i32, i32
  }
  func.func @transform_4(%arg0: i32) -> (i32, i32) {
    %c0_i32 = arith.constant 0 : i32
    %c0_i32_0 = arith.constant 0 : i32
    %c0_i32_1 = arith.constant 0 : i32
    return %c0_i32, %c0_i32_0 : i32, i32
  }
  func.func @transform_5(%arg0: i32) -> (i32, i32) {
    %c0_i32 = arith.constant 0 : i32
    %c0_i32_0 = arith.constant 0 : i32
    %c0_i32_1 = arith.constant 0 : i32
    return %c0_i32, %c0_i32_0 : i32, i32
  }
  func.func @transform_6(%arg0: i32) -> (i32, i32) {
    %c0_i32 = arith.constant 0 : i32
    %c0_i32_0 = arith.constant 0 : i32
    %c0_i32_1 = arith.constant 0 : i32
    return %c0_i32, %c0_i32_0 : i32, i32
  }
  func.func @transform_7(%arg0: i32) -> (i32, i32) {
    %c0_i32 = arith.constant 0 : i32
    %c0_i32_0 = arith.constant 0 : i32
    %c0_i32_1 = arith.constant 0 : i32
    return %c0_i32, %c0_i32_0 : i32, i32
  }
}

</mosaic_0001>

<llo_original>
// kernel: _transformer_block_fn.1
$region0: #{_transformer_block_fn.1}
  #allocation0 [shape = 'u32[]', space=smem, size = 0x4, offset = 0x4, fixed_abs, tag = 'smem constant byte address 0x4 - core index']
  #allocation1 [shape = 'u32[72,128]{1,0:T(1,128)}', space=vmem, size = 0x9000, scoped, tag = 'internal scratch']
  %s0 = inlined_call_operand.vmem [shape: bf16[3,128,8], index: 0, kind: input, shape index: {}]
  %s1 = inlined_call_operand.vmem [shape: f32[16,64], index: 1, kind: input, shape index: {}]
  %s2 = inlined_call_operand.vmem [shape: bf16[3,8,8], index: 2, kind: input, shape index: {}]
  %s3 = inlined_call_operand.vmem [shape: bf16[8,8,64], index: 3, kind: input, shape index: {}]
  %s4 = inlined_call_operand.vmem [shape: bf16[64,256], index: 4, kind: input, shape index: {}]
  %s5 = inlined_call_operand.vmem [shape: bf16[256,64], index: 5, kind: input, shape index: {}]
  %s6 = inlined_call_operand.vmem [shape: f32[8,256], index: 6, kind: input, shape index: {}]
  %s7 = inlined_call_operand.hbm [shape: f32[16,64], index: 7, kind: output, shape index: {}]
  %s8 = sld [smem:[#allocation0]]
  $region38: #{_transformer_block_fn.1} parent=0
    _
  %s10 = ssub.s32 1, %s8
  %s11 = scalar_select 0, %s10, %s8
  $region1: #{_transformer_block_fn.1} parent=0
    #allocation2 [shape = 'u8[8192]{0}', space=vmem, size = 0x2000, scoped, tag = 'output window, operand 0, single buffered']
    #allocation3 [shape = 's32[1]{0}', space=sflag, size = 0x4, scoped, tag = 'scoped memory for _transformer_block_fn.1']
    %12 = vsyncpa [#allocation3], 0
    // Predicated region
    $region2: #{_transformer_block_fn.1} parent=1 // pred_check
      _
    $region3: #{_transformer_block_fn.1} parent=1 // pred_check_branch
      %14 = sbr.rel (0) target = $region5
    $region4: #{_transformer_block_fn.1} parent=1 // pred_region
      _
    $region5: #{_transformer_block_fn.1} parent=1 // pred_fallthru
      _
    // Predicated region
    $region6: #{_transformer_block_fn.1} parent=1 // pred_check
      _
    $region7: #{_transformer_block_fn.1} parent=1 // pred_check_branch
      %16 = sbr.rel (0) target = $region9
    $region8: #{_transformer_block_fn.1} parent=1 // pred_region
      _
    $region9: #{_transformer_block_fn.1} parent=1 // pred_fallthru
      _
    // Predicated region
    $region10: #{_transformer_block_fn.1} parent=1 // pred_check
      _
    $region11: #{_transformer_block_fn.1} parent=1 // pred_check_branch
      %18 = sbr.rel (0) target = $region13
    $region12: #{_transformer_block_fn.1} parent=1 // pred_region
      _
    $region13: #{_transformer_block_fn.1} parent=1 // pred_fallthru
      _
    // Predicated region
    $region14: #{_transformer_block_fn.1} parent=1 // pred_check
      _
    $region15: #{_transformer_block_fn.1} parent=1 // pred_check_branch
      %20 = sbr.rel (0) target = $region17
    $region16: #{_transformer_block_fn.1} parent=1 // pred_region
      _
    $region17: #{_transformer_block_fn.1} parent=1 // pred_fallthru
      _
    // Predicated region
    $region18: #{_transformer_block_fn.1} parent=1 // pred_check
      _
    $region19: #{_transformer_block_fn.1} parent=1 // pred_check_branch
      %22 = sbr.rel (0) target = $region21
    $region20: #{_transformer_block_fn.1} parent=1 // pred_region
      _
    $region21: #{_transformer_block_fn.1} parent=1 // pred_fallthru
      _
    // Predicated region
    $region22: #{_transformer_block_fn.1} parent=1 // pred_check
      _
    $region23: #{_transformer_block_fn.1} parent=1 // pred_check_branch
      %24 = sbr.rel (0) target = $region25
    $region24: #{_transformer_block_fn.1} parent=1 // pred_region
      _
    $region25: #{_transformer_block_fn.1} parent=1 // pred_fallthru
      _
    // Predicated region
    $region26: #{_transformer_block_fn.1} parent=1 // pred_check
      _
    $region27: #{_transformer_block_fn.1} parent=1 // pred_check_branch
      %26 = sbr.rel (0) target = $region29
    $region28: #{_transformer_block_fn.1} parent=1 // pred_region
      _
    $region29: #{_transformer_block_fn.1} parent=1 // pred_fallthru
      _
    %v28 = vld [vmem:[%s0] sm:$0xf]
    %v29 = vld [vmem:[%s0 + $0x4] sm:$0xf]
    %v30 = vld [vmem:[%s0 + $0x8] sm:$0xf]
    %v31 = vld [vmem:[%s0 + $0xc] sm:$0xf]
    %v32 = vld [vmem:[%s0 + $0x10] sm:$0xf]
    %v33 = vld [vmem:[%s0 + $0x14] sm:$0xf]
    %v34 = vld [vmem:[%s0 + $0x18] sm:$0xf]
    %v35 = vld [vmem:[%s0 + $0x1c] sm:$0xf]
    %v36 = vld [vmem:[%s0 + $0x20] sm:$0xf]
    %v37 = vld [vmem:[%s0 + $0x24] sm:$0xf]
    %v38 = vld [vmem:[%s0 + $0x28] sm:$0xf]
    %v39 = vld [vmem:[%s0 + $0x2c] sm:$0xf]
    %v40 = vld [vmem:[%s0 + $0x30] sm:$0xf]
    %v41 = vld [vmem:[%s0 + $0x34] sm:$0xf]
    %v42 = vld [vmem:[%s0 + $0x38] sm:$0xf]
    %v43 = vld [vmem:[%s0 + $0x3c] sm:$0xf]
    %v44 = vld [vmem:[%s0 + $0x40] sm:$0xf]
    %v45 = vld [vmem:[%s0 + $0x44] sm:$0xf]
    %v46 = vld [vmem:[%s0 + $0x48] sm:$0xf]
    %v47 = vld [vmem:[%s0 + $0x4c] sm:$0xf]
    %v48 = vld [vmem:[%s0 + $0x50] sm:$0xf]
    %v49 = vld [vmem:[%s0 + $0x54] sm:$0xf]
    %v50 = vld [vmem:[%s0 + $0x58] sm:$0xf]
    %v51 = vld [vmem:[%s0 + $0x5c] sm:$0xf]
    %v52 = vld [vmem:[%s0 + $0x60] sm:$0xf]
    %v53 = vld [vmem:[%s0 + $0x64] sm:$0xf]
    %v54 = vld [vmem:[%s0 + $0x68] sm:$0xf]
    %v55 = vld [vmem:[%s0 + $0x6c] sm:$0xf]
    %v56 = vld [vmem:[%s0 + $0x70] sm:$0xf]
    %v57 = vld [vmem:[%s0 + $0x74] sm:$0xf]
    %v58 = vld [vmem:[%s0 + $0x78] sm:$0xf]
    %v59 = vld [vmem:[%s0 + $0x7c] sm:$0xf]
    %v60 = vld [vmem:[%s0 + $0x80] sm:$0xf]
    %v61 = vld [vmem:[%s0 + $0x84] sm:$0xf]
    %v62 = vld [vmem:[%s0 + $0x88] sm:$0xf]
    %v63 = vld [vmem:[%s0 + $0x8c] sm:$0xf]
    %v64 = vld [vmem:[%s0 + $0x90] sm:$0xf]
    %v65 = vld [vmem:[%s0 + $0x94] sm:$0xf]
    %v66 = vld [vmem:[%s0 + $0x98] sm:$0xf]
    %v67 = vld [vmem:[%s0 + $0x9c] sm:$0xf]
    %v68 = vld [vmem:[%s0 + $0xa0] sm:$0xf]
    %v69 = vld [vmem:[%s0 + $0xa4] sm:$0xf]
    %v70 = vld [vmem:[%s0 + $0xa8] sm:$0xf]
    %v71 = vld [vmem:[%s0 + $0xac] sm:$0xf]
    %v72 = vld [vmem:[%s0 + $0xb0] sm:$0xf]
    %v73 = vld [vmem:[%s0 + $0xb4] sm:$0xf]
    %v74 = vld [vmem:[%s0 + $0xb8] sm:$0xf]
    %v75 = vld [vmem:[%s0 + $0xbc] sm:$0xf]
    %v76 = vld [vmem:[%s2] sm:$0xf]
    %v77 = vld [vmem:[%s2 + $0x4] sm:$0xf]
    %v78 = vld [vmem:[%s2 + $0x8] sm:$0xf]
    %v95 = vunpack.c.l.b16 %v28
    %v96 = vunpack.c.l.b16 %v29
    %v97 = vunpack.c.l.b16 %v30
    %v98 = vunpack.c.l.b16 %v31
    %v99 = vunpack.c.l.b16 %v32
    %v100 = vunpack.c.l.b16 %v33
    %v101 = vunpack.c.l.b16 %v34
    %v102 = vunpack.c.l.b16 %v35
    %v103 = vunpack.c.l.b16 %v36
    %v104 = vunpack.c.l.b16 %v37
    %v105 = vunpack.c.l.b16 %v38
    %v106 = vunpack.c.l.b16 %v39
    %v107 = vunpack.c.l.b16 %v40
    %v108 = vunpack.c.l.b16 %v41
    %v109 = vunpack.c.l.b16 %v42
    %v110 = vunpack.c.l.b16 %v43
    %v111 = vpack.c.b16 %v96, %v95
    %v112 = vpack.c.b16 %v98, %v97
    %v113 = vpack.c.b16 %v100, %v99
    %v114 = vpack.c.b16 %v102, %v101
    %v115 = vpack.c.b16 %v104, %v103
    %v116 = vpack.c.b16 %v106, %v105
    %v117 = vpack.c.b16 %v108, %v107
    %v118 = vpack.c.b16 %v110, %v109
    %vm119 = vcmask 64512
    %v121 = vsel %vm119, %v111, 0
    %v124 = vsel %vm119, %v112, 0
    %v127 = vsel %vm119, %v113, 0
    %v130 = vsel %vm119, %v114, 0
    %v133 = vsel %vm119, %v115, 0
    %v136 = vsel %vm119, %v116, 0
    %v139 = vsel %vm119, %v117, 0
    %v142 = vsel %vm119, %v118, 0
    %vm144 = vcmask 1043456
    %v146 = vsel %vm144, %v76, 0
    %148 = vmatpush.bf16.msra.mxu0 0
    %149 = vmatpush.bf16.msra.mxu0 0
    %150 = vmatpush.bf16.msra.mxu0 0
    %151 = vmatpush.bf16.msra.mxu0 0
    %152 = vmatpush.bf16.msra.mxu0 0
    %153 = vmatpush.bf16.msra.mxu0 0
    %154 = vmatpush.bf16.msra.mxu0 0
    %155 = vmatpush.bf16.msra.mxu0 %v146
    %156 = vmatmul.bf16.gmra.mxu0 %v121
    %v157 = vpop.f32.mrf.mxu0
    %v158 = vadd.f32 0.0, %v157
    %v159 = vpop.f32.mrf.mxu0
    %v160 = vadd.f32 0.0, %v159
    %161 = vmatmul.bf16.gmra.mxu0 %v124
    %v162 = vpop.f32.mrf.mxu0
    %v163 = vadd.f32 0.0, %v162
    %v164 = vpop.f32.mrf.mxu0
    %v165 = vadd.f32 0.0, %v164
    %166 = vmatmul.bf16.gmra.mxu0 %v127
    %v167 = vpop.f32.mrf.mxu0
    %v168 = vadd.f32 0.0, %v167
    %v169 = vpop.f32.mrf.mxu0
    %v170 = vadd.f32 0.0, %v169
    %171 = vmatmul.bf16.gmra.mxu0 %v130
    %v172 = vpop.f32.mrf.mxu0
    %v173 = vadd.f32 0.0, %v172
    %v174 = vpop.f32.mrf.mxu0
    %v175 = vadd.f32 0.0, %v174
    %176 = vmatmul.bf16.gmra.mxu0 %v133
    %v177 = vpop.f32.mrf.mxu0
    %v178 = vadd.f32 0.0, %v177
    %v179 = vpop.f32.mrf.mxu0
    %v180 = vadd.f32 0.0, %v179
    %181 = vmatmul.bf16.gmra.mxu0 %v136
    %v182 = vpop.f32.mrf.mxu0
    %v183 = vadd.f32 0.0, %v182
    %v184 = vpop.f32.mrf.mxu0
    %v185 = vadd.f32 0.0, %v184
    %186 = vmatmul.bf16.gmra.mxu0 %v139
    %v187 = vpop.f32.mrf.mxu0
    %v188 = vadd.f32 0.0, %v187
    %v189 = vpop.f32.mrf.mxu0
    %v190 = vadd.f32 0.0, %v189
    %191 = vmatmul.bf16.gmra.mxu0 %v142
    %v192 = vpop.f32.mrf.mxu0
    %v193 = vadd.f32 0.0, %v192
    %v194 = vpop.f32.mrf.mxu0
    %v195 = vadd.f32 0.0, %v194
    %196 = vdwg.mxu0
    %v213 = vunpack.c.l.b16 %v44
    %v214 = vunpack.c.l.b16 %v45
    %v215 = vunpack.c.l.b16 %v46
    %v216 = vunpack.c.l.b16 %v47
    %v217 = vunpack.c.l.b16 %v48
    %v218 = vunpack.c.l.b16 %v49
    %v219 = vunpack.c.l.b16 %v50
    %v220 = vunpack.c.l.b16 %v51
    %v221 = vunpack.c.l.b16 %v52
    %v222 = vunpack.c.l.b16 %v53
    %v223 = vunpack.c.l.b16 %v54
    %v224 = vunpack.c.l.b16 %v55
    %v225 = vunpack.c.l.b16 %v56
    %v226 = vunpack.c.l.b16 %v57
    %v227 = vunpack.c.l.b16 %v58
    %v228 = vunpack.c.l.b16 %v59
    %v229 = vpack.c.b16 %v214, %v213
    %v230 = vpack.c.b16 %v216, %v215
    %v231 = vpack.c.b16 %v218, %v217
    %v232 = vpack.c.b16 %v220, %v219
    %v233 = vpack.c.b16 %v222, %v221
    %v234 = vpack.c.b16 %v224, %v223
    %v235 = vpack.c.b16 %v226, %v225
    %v236 = vpack.c.b16 %v228, %v227
    %v238 = vsel %vm119, %v229, 0
    %v241 = vsel %vm119, %v230, 0
    %v244 = vsel %vm119, %v231, 0
    %v247 = vsel %vm119, %v232, 0
    %v250 = vsel %vm119, %v233, 0
    %v253 = vsel %vm119, %v234, 0
    %v256 = vsel %vm119, %v235, 0
    %v259 = vsel %vm119, %v236, 0
    %v262 = vsel %vm144, %v77, 0
    %264 = vmatpush.bf16.msra.mxu0 0
    %265 = vmatpush.bf16.msra.mxu0 0
    %266 = vmatpush.bf16.msra.mxu0 0
    %267 = vmatpush.bf16.msra.mxu0 0
    %268 = vmatpush.bf16.msra.mxu0 0
    %269 = vmatpush.bf16.msra.mxu0 0
    %270 = vmatpush.bf16.msra.mxu0 0
    %271 = vmatpush.bf16.msra.mxu0 %v262
    %272 = vmatmul.bf16.gmra.mxu0 %v238
    %v273 = vpop.f32.mrf.mxu0
    %v274 = vadd.f32 0.0, %v273
    %v275 = vpop.f32.mrf.mxu0
    %v276 = vadd.f32 0.0, %v275
    %277 = vmatmul.bf16.gmra.mxu0 %v241
    %v278 = vpop.f32.mrf.mxu0
    %v279 = vadd.f32 0.0, %v278
    %v280 = vpop.f32.mrf.mxu0
    %v281 = vadd.f32 0.0, %v280
    %282 = vmatmul.bf16.gmra.mxu0 %v244
    %v283 = vpop.f32.mrf.mxu0
    %v284 = vadd.f32 0.0, %v283
    %v285 = vpop.f32.mrf.mxu0
    %v286 = vadd.f32 0.0, %v285
    %287 = vmatmul.bf16.gmra.mxu0 %v247
    %v288 = vpop.f32.mrf.mxu0
    %v289 = vadd.f32 0.0, %v288
    %v290 = vpop.f32.mrf.mxu0
    %v291 = vadd.f32 0.0, %v290
    %292 = vmatmul.bf16.gmra.mxu0 %v250
    %v293 = vpop.f32.mrf.mxu0
    %v294 = vadd.f32 0.0, %v293
    %v295 = vpop.f32.mrf.mxu0
    %v296 = vadd.f32 0.0, %v295
    %297 = vmatmul.bf16.gmra.mxu0 %v253
    %v298 = vpop.f32.mrf.mxu0
    %v299 = vadd.f32 0.0, %v298
    %v300 = vpop.f32.mrf.mxu0
    %v301 = vadd.f32 0.0, %v300
    %302 = vmatmul.bf16.gmra.mxu0 %v256
    %v303 = vpop.f32.mrf.mxu0
    %v304 = vadd.f32 0.0, %v303
    %v305 = vpop.f32.mrf.mxu0
    %v306 = vadd.f32 0.0, %v305
    %307 = vmatmul.bf16.gmra.mxu0 %v259
    %v308 = vpop.f32.mrf.mxu0
    %v309 = vadd.f32 0.0, %v308
    %v310 = vpop.f32.mrf.mxu0
    %v311 = vadd.f32 0.0, %v310
    %312 = vdwg.mxu0
    %v329 = vunpack.c.l.b16 %v60
    %v330 = vunpack.c.l.b16 %v61
    %v331 = vunpack.c.l.b16 %v62
    %v332 = vunpack.c.l.b16 %v63
    %v333 = vunpack.c.l.b16 %v64
    %v334 = vunpack.c.l.b16 %v65
    %v335 = vunpack.c.l.b16 %v66
    %v336 = vunpack.c.l.b16 %v67
    %v337 = vunpack.c.l.b16 %v68
    %v338 = vunpack.c.l.b16 %v69
    %v339 = vunpack.c.l.b16 %v70
    %v340 = vunpack.c.l.b16 %v71
    %v341 = vunpack.c.l.b16 %v72
    %v342 = vunpack.c.l.b16 %v73
    %v343 = vunpack.c.l.b16 %v74
    %v344 = vunpack.c.l.b16 %v75
    %v345 = vpack.c.b16 %v330, %v329
    %v346 = vpack.c.b16 %v332, %v331
    %v347 = vpack.c.b16 %v334, %v333
    %v348 = vpack.c.b16 %v336, %v335
    %v349 = vpack.c.b16 %v338, %v337
    %v350 = vpack.c.b16 %v340, %v339
    %v351 = vpack.c.b16 %v342, %v341
    %v352 = vpack.c.b16 %v344, %v343
    %v354 = vsel %vm119, %v345, 0
    %v357 = vsel %vm119, %v346, 0
    %v360 = vsel %vm119, %v347, 0
    %v363 = vsel %vm119, %v348, 0
    %v366 = vsel %vm119, %v349, 0
    %v369 = vsel %vm119, %v350, 0
    %v372 = vsel %vm119, %v351, 0
    %v375 = vsel %vm119, %v352, 0
    %v378 = vsel %vm144, %v78, 0
    %380 = vmatpush.bf16.msra.mxu0 0
    %381 = vmatpush.bf16.msra.mxu0 0
    %382 = vmatpush.bf16.msra.mxu0 0
    %383 = vmatpush.bf16.msra.mxu0 0
    %384 = vmatpush.bf16.msra.mxu0 0
    %385 = vmatpush.bf16.msra.mxu0 0
    %386 = vmatpush.bf16.msra.mxu0 0
    %387 = vmatpush.bf16.msra.mxu0 %v378
    %388 = vmatmul.bf16.gmra.mxu0 %v354
    %v389 = vpop.f32.mrf.mxu0
    %v390 = vadd.f32 0.0, %v389
    %v391 = vpop.f32.mrf.mxu0
    %v392 = vadd.f32 0.0, %v391
    %393 = vmatmul.bf16.gmra.mxu0 %v357
    %v394 = vpop.f32.mrf.mxu0
    %v395 = vadd.f32 0.0, %v394
    %v396 = vpop.f32.mrf.mxu0
    %v397 = vadd.f32 0.0, %v396
    %398 = vmatmul.bf16.gmra.mxu0 %v360
    %v399 = vpop.f32.mrf.mxu0
    %v400 = vadd.f32 0.0, %v399
    %v401 = vpop.f32.mrf.mxu0
    %v402 = vadd.f32 0.0, %v401
    %403 = vmatmul.bf16.gmra.mxu0 %v363
    %v404 = vpop.f32.mrf.mxu0
    %v405 = vadd.f32 0.0, %v404
    %v406 = vpop.f32.mrf.mxu0
    %v407 = vadd.f32 0.0, %v406
    %408 = vmatmul.bf16.gmra.mxu0 %v366
    %v409 = vpop.f32.mrf.mxu0
    %v410 = vadd.f32 0.0, %v409
    %v411 = vpop.f32.mrf.mxu0
    %v412 = vadd.f32 0.0, %v411
    %413 = vmatmul.bf16.gmra.mxu0 %v369
    %v414 = vpop.f32.mrf.mxu0
    %v415 = vadd.f32 0.0, %v414
    %v416 = vpop.f32.mrf.mxu0
    %v417 = vadd.f32 0.0, %v416
    %418 = vmatmul.bf16.gmra.mxu0 %v372
    %v419 = vpop.f32.mrf.mxu0
    %v420 = vadd.f32 0.0, %v419
    %v421 = vpop.f32.mrf.mxu0
    %v422 = vadd.f32 0.0, %v421
    %423 = vmatmul.bf16.gmra.mxu0 %v375
    %v424 = vpop.f32.mrf.mxu0
    %v425 = vadd.f32 0.0, %v424
    %v426 = vpop.f32.mrf.mxu0
    %v427 = vadd.f32 0.0, %v426
    %428 = vdwg.mxu0
    %v429 = vpack.c.bf16 %v158, %v158
    %v430 = vpack.c.bf16 %v160, %v160
    %v431 = vpack.c.bf16 %v163, %v163
    %v432 = vpack.c.bf16 %v165, %v165
    %v433 = vpack.c.bf16 %v168, %v168
    %v434 = vpack.c.bf16 %v170, %v170
    %v435 = vpack.c.bf16 %v173, %v173
    %v436 = vpack.c.bf16 %v175, %v175
    %v437 = vpack.c.bf16 %v178, %v178
    %v438 = vpack.c.bf16 %v180, %v180
    %v439 = vpack.c.bf16 %v183, %v183
    %v440 = vpack.c.bf16 %v185, %v185
    %v441 = vpack.c.bf16 %v188, %v188
    %v442 = vpack.c.bf16 %v190, %v190
    %v443 = vpack.c.bf16 %v193, %v193
    %v444 = vpack.c.bf16 %v195, %v195
    %v445 = vpack.c.bf16 %v274, %v274
    %v446 = vpack.c.bf16 %v276, %v276
    %v447 = vpack.c.bf16 %v279, %v279
    %v448 = vpack.c.bf16 %v281, %v281
    %v449 = vpack.c.bf16 %v284, %v284
    %v450 = vpack.c.bf16 %v286, %v286
    %v451 = vpack.c.bf16 %v289, %v289
    %v452 = vpack.c.bf16 %v291, %v291
    %v453 = vpack.c.bf16 %v294, %v294
    %v454 = vpack.c.bf16 %v296, %v296
    %v455 = vpack.c.bf16 %v299, %v299
    %v456 = vpack.c.bf16 %v301, %v301
    %v457 = vpack.c.bf16 %v304, %v304
    %v458 = vpack.c.bf16 %v306, %v306
    %v459 = vpack.c.bf16 %v309, %v309
    %v460 = vpack.c.bf16 %v311, %v311
    %v461 = vpack.c.bf16 %v390, %v390
    %v462 = vpack.c.bf16 %v392, %v392
    %v463 = vpack.c.bf16 %v395, %v395
    %v464 = vpack.c.bf16 %v397, %v397
    %v465 = vpack.c.bf16 %v400, %v400
    %v466 = vpack.c.bf16 %v402, %v402
    %v467 = vpack.c.bf16 %v405, %v405
    %v468 = vpack.c.bf16 %v407, %v407
    %v469 = vpack.c.bf16 %v410, %v410
    %v470 = vpack.c.bf16 %v412, %v412
    %v471 = vpack.c.bf16 %v415, %v415
    %v472 = vpack.c.bf16 %v417, %v417
    %v473 = vpack.c.bf16 %v420, %v420
    %v474 = vpack.c.bf16 %v422, %v422
    %v475 = vpack.c.bf16 %v425, %v425
    %v476 = vpack.c.bf16 %v427, %v427
    %v478 = vsel %vm119, %v429, 0
    %v481 = vsel %vm119, %v445, 0
    %483 = vmatpush.bf16.xpose.msra.mxu0 0
    %484 = vmatpush.bf16.xpose.msra.mxu0 0
    %485 = vmatpush.bf16.xpose.msra.mxu0 0
    %486 = vmatpush.bf16.xpose.msra.mxu0 0
    %487 = vmatpush.bf16.xpose.msra.mxu0 0
    %488 = vmatpush.bf16.xpose.msra.mxu0 0
    %489 = vmatpush.bf16.xpose.msra.mxu0 0
    %490 = vmatpush.bf16.xpose.msra.mxu0 %v481
    %491 = vmatmul.bf16.gmra.mxu0 %v478
    %v492 = vpop.f32.mrf.mxu0
    %v493 = vadd.f32 0.0, %v492
    %v494 = vpop.f32.mrf.mxu0
    %495 = vdwg.mxu0
    %v497 = vsel %vm119, %v430, 0
    %v500 = vsel %vm119, %v446, 0
    %502 = vmatpush.bf16.xpose.msra.mxu0 0
    %503 = vmatpush.bf16.xpose.msra.mxu0 0
    %504 = vmatpush.bf16.xpose.msra.mxu0 0
    %505 = vmatpush.bf16.xpose.msra.mxu0 0
    %506 = vmatpush.bf16.xpose.msra.mxu0 0
    %507 = vmatpush.bf16.xpose.msra.mxu0 0
    %508 = vmatpush.bf16.xpose.msra.mxu0 0
    %509 = vmatpush.bf16.xpose.msra.mxu0 %v500
    %510 = vmatmul.bf16.gmra.mxu0 %v497
    %v511 = vpop.f32.mrf.mxu0
    %v512 = vadd.f32 0.0, %v511
    %v513 = vpop.f32.mrf.mxu0
    %514 = vdwg.mxu0
    %v516 = vsel %vm119, %v431, 0
    %v519 = vsel %vm119, %v447, 0
    %521 = vmatpush.bf16.xpose.msra.mxu0 0
    %522 = vmatpush.bf16.xpose.msra.mxu0 0
    %523 = vmatpush.bf16.xpose.msra.mxu0 0
    %524 = vmatpush.bf16.xpose.msra.mxu0 0
    %525 = vmatpush.bf16.xpose.msra.mxu0 0
    %526 = vmatpush.bf16.xpose.msra.mxu0 0
    %527 = vmatpush.bf16.xpose.msra.mxu0 0
    %528 = vmatpush.bf16.xpose.msra.mxu0 %v519
    %529 = vmatmul.bf16.gmra.mxu0 %v516
    %v530 = vpop.f32.mrf.mxu0
    %v531 = vadd.f32 0.0, %v530
    %v532 = vpop.f32.mrf.mxu0
    %533 = vdwg.mxu0
    %v535 = vsel %vm119, %v432, 0
    %v538 = vsel %vm119, %v448, 0
    %540 = vmatpush.bf16.xpose.msra.mxu0 0
    %541 = vmatpush.bf16.xpose.msra.mxu0 0
    %542 = vmatpush.bf16.xpose.msra.mxu0 0
    %543 = vmatpush.bf16.xpose.msra.mxu0 0
    %544 = vmatpush.bf16.xpose.msra.mxu0 0
    %545 = vmatpush.bf16.xpose.msra.mxu0 0
    %546 = vmatpush.bf16.xpose.msra.mxu0 0
    %547 = vmatpush.bf16.xpose.msra.mxu0 %v538
    %548 = vmatmul.bf16.gmra.mxu0 %v535
    %v549 = vpop.f32.mrf.mxu0
    %v550 = vadd.f32 0.0, %v549
    %v551 = vpop.f32.mrf.mxu0
    %552 = vdwg.mxu0
    %v554 = vsel %vm119, %v433, 0
    %v557 = vsel %vm119, %v449, 0
    %559 = vmatpush.bf16.xpose.msra.mxu0 0
    %560 = vmatpush.bf16.xpose.msra.mxu0 0
    %561 = vmatpush.bf16.xpose.msra.mxu0 0
    %562 = vmatpush.bf16.xpose.msra.mxu0 0
    %563 = vmatpush.bf16.xpose.msra.mxu0 0
    %564 = vmatpush.bf16.xpose.msra.mxu0 0
    %565 = vmatpush.bf16.xpose.msra.mxu0 0
    %566 = vmatpush.bf16.xpose.msra.mxu0 %v557
    %567 = vmatmul.bf16.gmra.mxu0 %v554
    %v568 = vpop.f32.mrf.mxu0
    %v569 = vadd.f32 0.0, %v568
    %v570 = vpop.f32.mrf.mxu0
    %571 = vdwg.mxu0
    %v573 = vsel %vm119, %v434, 0
    %v576 = vsel %vm119, %v450, 0
    %578 = vmatpush.bf16.xpose.msra.mxu0 0
    %579 = vmatpush.bf16.xpose.msra.mxu0 0
    %580 = vmatpush.bf16.xpose.msra.mxu0 0
    %581 = vmatpush.bf16.xpose.msra.mxu0 0
    %582 = vmatpush.bf16.xpose.msra.mxu0 0
    %583 = vmatpush.bf16.xpose.msra.mxu0 0
    %584 = vmatpush.bf16.xpose.msra.mxu0 0
    %585 = vmatpush.bf16.xpose.msra.mxu0 %v576
    %586 = vmatmul.bf16.gmra.mxu0 %v573
    %v587 = vpop.f32.mrf.mxu0
    %v588 = vadd.f32 0.0, %v587
    %v589 = vpop.f32.mrf.mxu0
    %590 = vdwg.mxu0
    %v592 = vsel %vm119, %v435, 0
    %v595 = vsel %vm119, %v451, 0
    %597 = vmatpush.bf16.xpose.msra.mxu0 0
    %598 = vmatpush.bf16.xpose.msra.mxu0 0
    %599 = vmatpush.bf16.xpose.msra.mxu0 0
    %600 = vmatpush.bf16.xpose.msra.mxu0 0
    %601 = vmatpush.bf16.xpose.msra.mxu0 0
    %602 = vmatpush.bf16.xpose.msra.mxu0 0
    %603 = vmatpush.bf16.xpose.msra.mxu0 0
    %604 = vmatpush.bf16.xpose.msra.mxu0 %v595
    %605 = vmatmul.bf16.gmra.mxu0 %v592
    %v606 = vpop.f32.mrf.mxu0
    %v607 = vadd.f32 0.0, %v606
    %v608 = vpop.f32.mrf.mxu0
    %609 = vdwg.mxu0
    %v611 = vsel %vm119, %v436, 0
    %v614 = vsel %vm119, %v452, 0
    %616 = vmatpush.bf16.xpose.msra.mxu0 0
    %617 = vmatpush.bf16.xpose.msra.mxu0 0
    %618 = vmatpush.bf16.xpose.msra.mxu0 0
    %619 = vmatpush.bf16.xpose.msra.mxu0 0
    %620 = vmatpush.bf16.xpose.msra.mxu0 0
    %621 = vmatpush.bf16.xpose.msra.mxu0 0
    %622 = vmatpush.bf16.xpose.msra.mxu0 0
    %623 = vmatpush.bf16.xpose.msra.mxu0 %v614
    %624 = vmatmul.bf16.gmra.mxu0 %v611
    %v625 = vpop.f32.mrf.mxu0
    %v626 = vadd.f32 0.0, %v625
    %v627 = vpop.f32.mrf.mxu0
    %628 = vdwg.mxu0
    %v630 = vsel %vm119, %v437, 0
    %v633 = vsel %vm119, %v453, 0
    %635 = vmatpush.bf16.xpose.msra.mxu0 0
    %636 = vmatpush.bf16.xpose.msra.mxu0 0
    %637 = vmatpush.bf16.xpose.msra.mxu0 0
    %638 = vmatpush.bf16.xpose.msra.mxu0 0
    %639 = vmatpush.bf16.xpose.msra.mxu0 0
    %640 = vmatpush.bf16.xpose.msra.mxu0 0
    %641 = vmatpush.bf16.xpose.msra.mxu0 0
    %642 = vmatpush.bf16.xpose.msra.mxu0 %v633
    %643 = vmatmul.bf16.gmra.mxu0 %v630
    %v644 = vpop.f32.mrf.mxu0
    %v645 = vadd.f32 0.0, %v644
    %v646 = vpop.f32.mrf.mxu0
    %647 = vdwg.mxu0
    %v649 = vsel %vm119, %v438, 0
    %v652 = vsel %vm119, %v454, 0
    %654 = vmatpush.bf16.xpose.msra.mxu0 0
    %655 = vmatpush.bf16.xpose.msra.mxu0 0
    %656 = vmatpush.bf16.xpose.msra.mxu0 0
    %657 = vmatpush.bf16.xpose.msra.mxu0 0
    %658 = vmatpush.bf16.xpose.msra.mxu0 0
    %659 = vmatpush.bf16.xpose.msra.mxu0 0
    %660 = vmatpush.bf16.xpose.msra.mxu0 0
    %661 = vmatpush.bf16.xpose.msra.mxu0 %v652
    %662 = vmatmul.bf16.gmra.mxu0 %v649
    %v663 = vpop.f32.mrf.mxu0
    %v664 = vadd.f32 0.0, %v663
    %v665 = vpop.f32.mrf.mxu0
    %666 = vdwg.mxu0
    %v668 = vsel %vm119, %v439, 0
    %v671 = vsel %vm119, %v455, 0
    %673 = vmatpush.bf16.xpose.msra.mxu0 0
    %674 = vmatpush.bf16.xpose.msra.mxu0 0
    %675 = vmatpush.bf16.xpose.msra.mxu0 0
    %676 = vmatpush.bf16.xpose.msra.mxu0 0
    %677 = vmatpush.bf16.xpose.msra.mxu0 0
    %678 = vmatpush.bf16.xpose.msra.mxu0 0
    %679 = vmatpush.bf16.xpose.msra.mxu0 0
    %680 = vmatpush.bf16.xpose.msra.mxu0 %v671
    %681 = vmatmul.bf16.gmra.mxu0 %v668
    %v682 = vpop.f32.mrf.mxu0
    %v683 = vadd.f32 0.0, %v682
    %v684 = vpop.f32.mrf.mxu0
    %685 = vdwg.mxu0
    %v687 = vsel %vm119, %v440, 0
    %v690 = vsel %vm119, %v456, 0
    %692 = vmatpush.bf16.xpose.msra.mxu0 0
    %693 = vmatpush.bf16.xpose.msra.mxu0 0
    %694 = vmatpush.bf16.xpose.msra.mxu0 0
    %695 = vmatpush.bf16.xpose.msra.mxu0 0
    %696 = vmatpush.bf16.xpose.msra.mxu0 0
    %697 = vmatpush.bf16.xpose.msra.mxu0 0
    %698 = vmatpush.bf16.xpose.msra.mxu0 0
    %699 = vmatpush.bf16.xpose.msra.mxu0 %v690
    %700 = vmatmul.bf16.gmra.mxu0 %v687
    %v701 = vpop.f32.mrf.mxu0
    %v702 = vadd.f32 0.0, %v701
    %v703 = vpop.f32.mrf.mxu0
    %704 = vdwg.mxu0
    %v706 = vsel %vm119, %v441, 0
    %v709 = vsel %vm119, %v457, 0
    %711 = vmatpush.bf16.xpose.msra.mxu0 0
    %712 = vmatpush.bf16.xpose.msra.mxu0 0
    %713 = vmatpush.bf16.xpose.msra.mxu0 0
    %714 = vmatpush.bf16.xpose.msra.mxu0 0
    %715 = vmatpush.bf16.xpose.msra.mxu0 0
    %716 = vmatpush.bf16.xpose.msra.mxu0 0
    %717 = vmatpush.bf16.xpose.msra.mxu0 0
    %718 = vmatpush.bf16.xpose.msra.mxu0 %v709
    %719 = vmatmul.bf16.gmra.mxu0 %v706
    %v720 = vpop.f32.mrf.mxu0
    %v721 = vadd.f32 0.0, %v720
    %v722 = vpop.f32.mrf.mxu0
    %723 = vdwg.mxu0
    %v725 = vsel %vm119, %v442, 0
    %v728 = vsel %vm119, %v458, 0
    %730 = vmatpush.bf16.xpose.msra.mxu0 0
    %731 = vmatpush.bf16.xpose.msra.mxu0 0
    %732 = vmatpush.bf16.xpose.msra.mxu0 0
    %733 = vmatpush.bf16.xpose.msra.mxu0 0
    %734 = vmatpush.bf16.xpose.msra.mxu0 0
    %735 = vmatpush.bf16.xpose.msra.mxu0 0
    %736 = vmatpush.bf16.xpose.msra.mxu0 0
    %737 = vmatpush.bf16.xpose.msra.mxu0 %v728
    %738 = vmatmul.bf16.gmra.mxu0 %v725
    %v739 = vpop.f32.mrf.mxu0
    %v740 = vadd.f32 0.0, %v739
    %v741 = vpop.f32.mrf.mxu0
    %742 = vdwg.mxu0
    %v744 = vsel %vm119, %v443, 0
    %v747 = vsel %vm119, %v459, 0
    %749 = vmatpush.bf16.xpose.msra.mxu0 0
    %750 = vmatpush.bf16.xpose.msra.mxu0 0
    %751 = vmatpush.bf16.xpose.msra.mxu0 0
    %752 = vmatpush.bf16.xpose.msra.mxu0 0
    %753 = vmatpush.bf16.xpose.msra.mxu0 0
    %754 = vmatpush.bf16.xpose.msra.mxu0 0
    %755 = vmatpush.bf16.xpose.msra.mxu0 0
    %756 = vmatpush.bf16.xpose.msra.mxu0 %v747
    %757 = vmatmul.bf16.gmra.mxu0 %v744
    %v758 = vpop.f32.mrf.mxu0
    %v759 = vadd.f32 0.0, %v758
    %v760 = vpop.f32.mrf.mxu0
    %761 = vdwg.mxu0
    %v763 = vsel %vm119, %v444, 0
    %v766 = vsel %vm119, %v460, 0
    %768 = vmatpush.bf16.xpose.msra.mxu0 0
    %769 = vmatpush.bf16.xpose.msra.mxu0 0
    %770 = vmatpush.bf16.xpose.msra.mxu0 0
    %771 = vmatpush.bf16.xpose.msra.mxu0 0
    %772 = vmatpush.bf16.xpose.msra.mxu0 0
    %773 = vmatpush.bf16.xpose.msra.mxu0 0
    %774 = vmatpush.bf16.xpose.msra.mxu0 0
    %775 = vmatpush.bf16.xpose.msra.mxu0 %v766
    %776 = vmatmul.bf16.gmra.mxu0 %v763
    %v777 = vpop.f32.mrf.mxu0
    %v778 = vadd.f32 0.0, %v777
    %v779 = vpop.f32.mrf.mxu0
    %780 = vdwg.mxu0
    %v781 = vsel %vm119, %v493, -inf
    %782 = vmax.xlane.f32.xlu0 %v781
    %v783 = vpop.xlane.xlu0 %782
    %v784 = vsel %vm119, %v512, -inf
    %785 = vmax.xlane.f32.xlu0 %v784
    %v786 = vpop.xlane.xlu0 %785
    %v787 = vsel %vm119, %v531, -inf
    %788 = vmax.xlane.f32.xlu0 %v787
    %v789 = vpop.xlane.xlu0 %788
    %v790 = vsel %vm119, %v550, -inf
    %791 = vmax.xlane.f32.xlu0 %v790
    %v792 = vpop.xlane.xlu0 %791
    %v793 = vsel %vm119, %v569, -inf
    %794 = vmax.xlane.f32.xlu0 %v793
    %v795 = vpop.xlane.xlu0 %794
    %v796 = vsel %vm119, %v588, -inf
    %797 = vmax.xlane.f32.xlu0 %v796
    %v798 = vpop.xlane.xlu0 %797
    %v799 = vsel %vm119, %v607, -inf
    %800 = vmax.xlane.f32.xlu0 %v799
    %v801 = vpop.xlane.xlu0 %800
    %v802 = vsel %vm119, %v626, -inf
    %803 = vmax.xlane.f32.xlu0 %v802
    %v804 = vpop.xlane.xlu0 %803
    %v805 = vsel %vm119, %v645, -inf
    %806 = vmax.xlane.f32.xlu0 %v805
    %v807 = vpop.xlane.xlu0 %806
    %v808 = vsel %vm119, %v664, -inf
    %809 = vmax.xlane.f32.xlu0 %v808
    %v810 = vpop.xlane.xlu0 %809
    %v811 = vsel %vm119, %v683, -inf
    %812 = vmax.xlane.f32.xlu0 %v811
    %v813 = vpop.xlane.xlu0 %812
    %v814 = vsel %vm119, %v702, -inf
    %815 = vmax.xlane.f32.xlu0 %v814
    %v816 = vpop.xlane.xlu0 %815
    %v817 = vsel %vm119, %v721, -inf
    %818 = vmax.xlane.f32.xlu0 %v817
    %v819 = vpop.xlane.xlu0 %818
    %v820 = vsel %vm119, %v740, -inf
    %821 = vmax.xlane.f32.xlu0 %v820
    %v822 = vpop.xlane.xlu0 %821
    %v823 = vsel %vm119, %v759, -inf
    %824 = vmax.xlane.f32.xlu0 %v823
    %v825 = vpop.xlane.xlu0 %824
    %v826 = vsel %vm119, %v778, -inf
    %827 = vmax.xlane.f32.xlu0 %v826
    %v828 = vpop.xlane.xlu0 %827
    %v829 = vsub.f32 %v493, %v783
    %v830 = vsub.f32 %v512, %v786
    %v831 = vsub.f32 %v531, %v789
    %v832 = vsub.f32 %v550, %v792
    %v833 = vsub.f32 %v569, %v795
    %v834 = vsub.f32 %v588, %v798
    %v835 = vsub.f32 %v607, %v801
    %v836 = vsub.f32 %v626, %v804
    %v837 = vsub.f32 %v645, %v807
    %v838 = vsub.f32 %v664, %v810
    %v839 = vsub.f32 %v683, %v813
    %v840 = vsub.f32 %v702, %v816
    %v841 = vsub.f32 %v721, %v819
    %v842 = vsub.f32 %v740, %v822
    %v843 = vsub.f32 %v759, %v825
    %v844 = vsub.f32 %v778, %v828
    %v845 = vmul.f32 %v829, 1.442695
    %v846 = vpow.pop %v845
    %v847 = vmul.f32 %v830, 1.442695
    %v848 = vpow.pop %v847
    %v849 = vmul.f32 %v831, 1.442695
    %v850 = vpow.pop %v849
    %v851 = vmul.f32 %v832, 1.442695
    %v852 = vpow.pop %v851
    %v853 = vmul.f32 %v833, 1.442695
    %v854 = vpow.pop %v853
    %v855 = vmul.f32 %v834, 1.442695
    %v856 = vpow.pop %v855
    %v857 = vmul.f32 %v835, 1.442695
    %v858 = vpow.pop %v857
    %v859 = vmul.f32 %v836, 1.442695
    %v860 = vpow.pop %v859
    %v861 = vmul.f32 %v837, 1.442695
    %v862 = vpow.pop %v861
    %v863 = vmul.f32 %v838, 1.442695
    %v864 = vpow.pop %v863
    %v865 = vmul.f32 %v839, 1.442695
    %v866 = vpow.pop %v865
    %v867 = vmul.f32 %v840, 1.442695
    %v868 = vpow.pop %v867
    %v869 = vmul.f32 %v841, 1.442695
    %v870 = vpow.pop %v869
    %v871 = vmul.f32 %v842, 1.442695
    %v872 = vpow.pop %v871
    %v873 = vmul.f32 %v843, 1.442695
    %v874 = vpow.pop %v873
    %v875 = vmul.f32 %v844, 1.442695
    %v876 = vpow.pop %v875
    %v877 = vsel %vm119, %v846, 0.0
    %878 = vadd.xlane.f32.xlu0 %v877
    %v879 = vpop.xlane.xlu0 %878
    %v880 = vsel %vm119, %v848, 0.0
    %881 = vadd.xlane.f32.xlu0 %v880
    %v882 = vpop.xlane.xlu0 %881
    %v883 = vsel %vm119, %v850, 0.0
    %884 = vadd.xlane.f32.xlu0 %v883
    %v885 = vpop.xlane.xlu0 %884
    %v886 = vsel %vm119, %v852, 0.0
    %887 = vadd.xlane.f32.xlu0 %v886
    %v888 = vpop.xlane.xlu0 %887
    %v889 = vsel %vm119, %v854, 0.0
    %890 = vadd.xlane.f32.xlu0 %v889
    %v891 = vpop.xlane.xlu0 %890
    %v892 = vsel %vm119, %v856, 0.0
    %893 = vadd.xlane.f32.xlu0 %v892
    %v894 = vpop.xlane.xlu0 %893
    %v895 = vsel %vm119, %v858, 0.0
    %896 = vadd.xlane.f32.xlu0 %v895
    %v897 = vpop.xlane.xlu0 %896
    %v898 = vsel %vm119, %v860, 0.0
    %899 = vadd.xlane.f32.xlu0 %v898
    %v900 = vpop.xlane.xlu0 %899
    %v901 = vsel %vm119, %v862, 0.0
    %902 = vadd.xlane.f32.xlu0 %v901
    %v903 = vpop.xlane.xlu0 %902
    %v904 = vsel %vm119, %v864, 0.0
    %905 = vadd.xlane.f32.xlu0 %v904
    %v906 = vpop.xlane.xlu0 %905
    %v907 = vsel %vm119, %v866, 0.0
    %908 = vadd.xlane.f32.xlu0 %v907
    %v909 = vpop.xlane.xlu0 %908
    %v910 = vsel %vm119, %v868, 0.0
    %911 = vadd.xlane.f32.xlu0 %v910
    %v912 = vpop.xlane.xlu0 %911
    %v913 = vsel %vm119, %v870, 0.0
    %914 = vadd.xlane.f32.xlu0 %v913
    %v915 = vpop.xlane.xlu0 %914
    %v916 = vsel %vm119, %v872, 0.0
    %917 = vadd.xlane.f32.xlu0 %v916
    %v918 = vpop.xlane.xlu0 %917
    %v919 = vsel %vm119, %v874, 0.0
    %920 = vadd.xlane.f32.xlu0 %v919
    %v921 = vpop.xlane.xlu0 %920
    %v922 = vsel %vm119, %v876, 0.0
    %923 = vadd.xlane.f32.xlu0 %v922
    %v924 = vpop.xlane.xlu0 %923
    %v925 = vrcp.pop %v879
    %v926 = vrcp.pop %v882
    %v927 = vrcp.pop %v885
    %v928 = vrcp.pop %v888
    %v929 = vrcp.pop %v891
    %v930 = vrcp.pop %v894
    %v931 = vrcp.pop %v897
    %v932 = vrcp.pop %v900
    %v933 = vrcp.pop %v903
    %v934 = vrcp.pop %v906
    %v935 = vrcp.pop %v909
    %v936 = vrcp.pop %v912
    %v937 = vrcp.pop %v915
    %v938 = vrcp.pop %v918
    %v939 = vrcp.pop %v921
    %v940 = vrcp.pop %v924
    %v941 = vmul.f32 %v846, %v925
    %v942 = vmul.f32 %v848, %v926
    %v943 = vmul.f32 %v850, %v927
    %v944 = vmul.f32 %v852, %v928
    %v945 = vmul.f32 %v854, %v929
    %v946 = vmul.f32 %v856, %v930
    %v947 = vmul.f32 %v858, %v931
    %v948 = vmul.f32 %v860, %v932
    %v949 = vmul.f32 %v862, %v933
    %v950 = vmul.f32 %v864, %v934
    %v951 = vmul.f32 %v866, %v935
    %v952 = vmul.f32 %v868, %v936
    %v953 = vmul.f32 %v870, %v937
    %v954 = vmul.f32 %v872, %v938
    %v955 = vmul.f32 %v874, %v939
    %v956 = vmul.f32 %v876, %v940
    %v957 = vpack.c.bf16 %v941, %v941
    %v958 = vpack.c.bf16 %v942, %v942
    %v959 = vpack.c.bf16 %v943, %v943
    %v960 = vpack.c.bf16 %v944, %v944
    %v961 = vpack.c.bf16 %v945, %v945
    %v962 = vpack.c.bf16 %v946, %v946
    %v963 = vpack.c.bf16 %v947, %v947
    %v964 = vpack.c.bf16 %v948, %v948
    %v965 = vpack.c.bf16 %v949, %v949
    %v966 = vpack.c.bf16 %v950, %v950
    %v967 = vpack.c.bf16 %v951, %v951
    %v968 = vpack.c.bf16 %v952, %v952
    %v969 = vpack.c.bf16 %v953, %v953
    %v970 = vpack.c.bf16 %v954, %v954
    %v971 = vpack.c.bf16 %v955, %v955
    %v972 = vpack.c.bf16 %v956, %v956
    %v974 = vsel %vm119, %v957, 0
    %v977 = vsel %vm144, %v461, 0
    %979 = vmatpush.bf16.msra.mxu0 0
    %980 = vmatpush.bf16.msra.mxu0 0
    %981 = vmatpush.bf16.msra.mxu0 0
    %982 = vmatpush.bf16.msra.mxu0 0
    %983 = vmatpush.bf16.msra.mxu0 0
    %984 = vmatpush.bf16.msra.mxu0 0
    %985 = vmatpush.bf16.msra.mxu0 0
    %986 = vmatpush.bf16.msra.mxu0 %v977
    %987 = vmatmul.bf16.gmra.mxu0 %v974
    %v988 = vpop.f32.mrf.mxu0
    %v989 = vadd.f32 0.0, %v988
    %v990 = vpop.f32.mrf.mxu0
    %991 = vdwg.mxu0
    %v993 = vsel %vm119, %v958, 0
    %v996 = vsel %vm144, %v462, 0
    %998 = vmatpush.bf16.msra.mxu0 0
    %999 = vmatpush.bf16.msra.mxu0 0
    %1000 = vmatpush.bf16.msra.mxu0 0
    %1001 = vmatpush.bf16.msra.mxu0 0
    %1002 = vmatpush.bf16.msra.mxu0 0
    %1003 = vmatpush.bf16.msra.mxu0 0
    %1004 = vmatpush.bf16.msra.mxu0 0
    %1005 = vmatpush.bf16.msra.mxu0 %v996
    %1006 = vmatmul.bf16.gmra.mxu0 %v993
    %v1007 = vpop.f32.mrf.mxu0
    %v1008 = vadd.f32 0.0, %v1007
    %v1009 = vpop.f32.mrf.mxu0
    %1010 = vdwg.mxu0
    %v1012 = vsel %vm119, %v959, 0
    %v1015 = vsel %vm144, %v463, 0
    %1017 = vmatpush.bf16.msra.mxu0 0
    %1018 = vmatpush.bf16.msra.mxu0 0
    %1019 = vmatpush.bf16.msra.mxu0 0
    %1020 = vmatpush.bf16.msra.mxu0 0
    %1021 = vmatpush.bf16.msra.mxu0 0
    %1022 = vmatpush.bf16.msra.mxu0 0
    %1023 = vmatpush.bf16.msra.mxu0 0
    %1024 = vmatpush.bf16.msra.mxu0 %v1015
    %1025 = vmatmul.bf16.gmra.mxu0 %v1012
    %v1026 = vpop.f32.mrf.mxu0
    %v1027 = vadd.f32 0.0, %v1026
    %v1028 = vpop.f32.mrf.mxu0
    %1029 = vdwg.mxu0
    %v1031 = vsel %vm119, %v960, 0
    %v1034 = vsel %vm144, %v464, 0
    %1036 = vmatpush.bf16.msra.mxu0 0
    %1037 = vmatpush.bf16.msra.mxu0 0
    %1038 = vmatpush.bf16.msra.mxu0 0
    %1039 = vmatpush.bf16.msra.mxu0 0
    %1040 = vmatpush.bf16.msra.mxu0 0
    %1041 = vmatpush.bf16.msra.mxu0 0
    %1042 = vmatpush.bf16.msra.mxu0 0
    %1043 = vmatpush.bf16.msra.mxu0 %v1034
    %1044 = vmatmul.bf16.gmra.mxu0 %v1031
    %v1045 = vpop.f32.mrf.mxu0
    %v1046 = vadd.f32 0.0, %v1045
    %v1047 = vpop.f32.mrf.mxu0
    %1048 = vdwg.mxu0
    %v1050 = vsel %vm119, %v961, 0
    %v1053 = vsel %vm144, %v465, 0
    %1055 = vmatpush.bf16.msra.mxu0 0
    %1056 = vmatpush.bf16.msra.mxu0 0
    %1057 = vmatpush.bf16.msra.mxu0 0
    %1058 = vmatpush.bf16.msra.mxu0 0
    %1059 = vmatpush.bf16.msra.mxu0 0
    %1060 = vmatpush.bf16.msra.mxu0 0
    %1061 = vmatpush.bf16.msra.mxu0 0
    %1062 = vmatpush.bf16.msra.mxu0 %v1053
    %1063 = vmatmul.bf16.gmra.mxu0 %v1050
    %v1064 = vpop.f32.mrf.mxu0
    %v1065 = vadd.f32 0.0, %v1064
    %v1066 = vpop.f32.mrf.mxu0
    %1067 = vdwg.mxu0
    %v1069 = vsel %vm119, %v962, 0
    %v1072 = vsel %vm144, %v466, 0
    %1074 = vmatpush.bf16.msra.mxu0 0
    %1075 = vmatpush.bf16.msra.mxu0 0
    %1076 = vmatpush.bf16.msra.mxu0 0
    %1077 = vmatpush.bf16.msra.mxu0 0
    %1078 = vmatpush.bf16.msra.mxu0 0
    %1079 = vmatpush.bf16.msra.mxu0 0
    %1080 = vmatpush.bf16.msra.mxu0 0
    %1081 = vmatpush.bf16.msra.mxu0 %v1072
    %1082 = vmatmul.bf16.gmra.mxu0 %v1069
    %v1083 = vpop.f32.mrf.mxu0
    %v1084 = vadd.f32 0.0, %v1083
    %v1085 = vpop.f32.mrf.mxu0
    %1086 = vdwg.mxu0
    %v1088 = vsel %vm119, %v963, 0
    %v1091 = vsel %vm144, %v467, 0
    %1093 = vmatpush.bf16.msra.mxu0 0
    %1094 = vmatpush.bf16.msra.mxu0 0
    %1095 = vmatpush.bf16.msra.mxu0 0
    %1096 = vmatpush.bf16.msra.mxu0 0
    %1097 = vmatpush.bf16.msra.mxu0 0
    %1098 = vmatpush.bf16.msra.mxu0 0
    %1099 = vmatpush.bf16.msra.mxu0 0
    %1100 = vmatpush.bf16.msra.mxu0 %v1091
    %1101 = vmatmul.bf16.gmra.mxu0 %v1088
    %v1102 = vpop.f32.mrf.mxu0
    %v1103 = vadd.f32 0.0, %v1102
    %v1104 = vpop.f32.mrf.mxu0
    %1105 = vdwg.mxu0
    %v1107 = vsel %vm119, %v964, 0
    %v1110 = vsel %vm144, %v468, 0
    %1112 = vmatpush.bf16.msra.mxu0 0
    %1113 = vmatpush.bf16.msra.mxu0 0
    %1114 = vmatpush.bf16.msra.mxu0 0
    %1115 = vmatpush.bf16.msra.mxu0 0
    %1116 = vmatpush.bf16.msra.mxu0 0
    %1117 = vmatpush.bf16.msra.mxu0 0
    %1118 = vmatpush.bf16.msra.mxu0 0
    %1119 = vmatpush.bf16.msra.mxu0 %v1110
    %1120 = vmatmul.bf16.gmra.mxu0 %v1107
    %v1121 = vpop.f32.mrf.mxu0
    %v1122 = vadd.f32 0.0, %v1121
    %v1123 = vpop.f32.mrf.mxu0
    %1124 = vdwg.mxu0
    %v1126 = vsel %vm119, %v965, 0
    %v1129 = vsel %vm144, %v469, 0
    %1131 = vmatpush.bf16.msra.mxu0 0
    %1132 = vmatpush.bf16.msra.mxu0 0
    %1133 = vmatpush.bf16.msra.mxu0 0
    %1134 = vmatpush.bf16.msra.mxu0 0
    %1135 = vmatpush.bf16.msra.mxu0 0
    %1136 = vmatpush.bf16.msra.mxu0 0
    %1137 = vmatpush.bf16.msra.mxu0 0
    %1138 = vmatpush.bf16.msra.mxu0 %v1129
    %1139 = vmatmul.bf16.gmra.mxu0 %v1126
    %v1140 = vpop.f32.mrf.mxu0
    %v1141 = vadd.f32 0.0, %v1140
    %v1142 = vpop.f32.mrf.mxu0
    %1143 = vdwg.mxu0
    %v1145 = vsel %vm119, %v966, 0
    %v1148 = vsel %vm144, %v470, 0
    %1150 = vmatpush.bf16.msra.mxu0 0
    %1151 = vmatpush.bf16.msra.mxu0 0
    %1152 = vmatpush.bf16.msra.mxu0 0
    %1153 = vmatpush.bf16.msra.mxu0 0
    %1154 = vmatpush.bf16.msra.mxu0 0
    %1155 = vmatpush.bf16.msra.mxu0 0
    %1156 = vmatpush.bf16.msra.mxu0 0
    %1157 = vmatpush.bf16.msra.mxu0 %v1148
    %1158 = vmatmul.bf16.gmra.mxu0 %v1145
    %v1159 = vpop.f32.mrf.mxu0
    %v1160 = vadd.f32 0.0, %v1159
    %v1161 = vpop.f32.mrf.mxu0
    %1162 = vdwg.mxu0
    %v1164 = vsel %vm119, %v967, 0
    %v1167 = vsel %vm144, %v471, 0
    %1169 = vmatpush.bf16.msra.mxu0 0
    %1170 = vmatpush.bf16.msra.mxu0 0
    %1171 = vmatpush.bf16.msra.mxu0 0
    %1172 = vmatpush.bf16.msra.mxu0 0
    %1173 = vmatpush.bf16.msra.mxu0 0
    %1174 = vmatpush.bf16.msra.mxu0 0
    %1175 = vmatpush.bf16.msra.mxu0 0
    %1176 = vmatpush.bf16.msra.mxu0 %v1167
    %1177 = vmatmul.bf16.gmra.mxu0 %v1164
    %v1178 = vpop.f32.mrf.mxu0
    %v1179 = vadd.f32 0.0, %v1178
    %v1180 = vpop.f32.mrf.mxu0
    %1181 = vdwg.mxu0
    %v1183 = vsel %vm119, %v968, 0
    %v1186 = vsel %vm144, %v472, 0
    %1188 = vmatpush.bf16.msra.mxu0 0
    %1189 = vmatpush.bf16.msra.mxu0 0
    %1190 = vmatpush.bf16.msra.mxu0 0
    %1191 = vmatpush.bf16.msra.mxu0 0
    %1192 = vmatpush.bf16.msra.mxu0 0
    %1193 = vmatpush.bf16.msra.mxu0 0
    %1194 = vmatpush.bf16.msra.mxu0 0
    %1195 = vmatpush.bf16.msra.mxu0 %v1186
    %1196 = vmatmul.bf16.gmra.mxu0 %v1183
    %v1197 = vpop.f32.mrf.mxu0
    %v1198 = vadd.f32 0.0, %v1197
    %v1199 = vpop.f32.mrf.mxu0
    %1200 = vdwg.mxu0
    %v1202 = vsel %vm119, %v969, 0
    %v1205 = vsel %vm144, %v473, 0
    %1207 = vmatpush.bf16.msra.mxu0 0
    %1208 = vmatpush.bf16.msra.mxu0 0
    %1209 = vmatpush.bf16.msra.mxu0 0
    %1210 = vmatpush.bf16.msra.mxu0 0
    %1211 = vmatpush.bf16.msra.mxu0 0
    %1212 = vmatpush.bf16.msra.mxu0 0
    %1213 = vmatpush.bf16.msra.mxu0 0
    %1214 = vmatpush.bf16.msra.mxu0 %v1205
    %1215 = vmatmul.bf16.gmra.mxu0 %v1202
    %v1216 = vpop.f32.mrf.mxu0
    %v1217 = vadd.f32 0.0, %v1216
    %v1218 = vpop.f32.mrf.mxu0
    %1219 = vdwg.mxu0
    %v1221 = vsel %vm119, %v970, 0
    %v1224 = vsel %vm144, %v474, 0
    %1226 = vmatpush.bf16.msra.mxu0 0
    %1227 = vmatpush.bf16.msra.mxu0 0
    %1228 = vmatpush.bf16.msra.mxu0 0
    %1229 = vmatpush.bf16.msra.mxu0 0
    %1230 = vmatpush.bf16.msra.mxu0 0
    %1231 = vmatpush.bf16.msra.mxu0 0
    %1232 = vmatpush.bf16.msra.mxu0 0
    %1233 = vmatpush.bf16.msra.mxu0 %v1224
    %1234 = vmatmul.bf16.gmra.mxu0 %v1221
    %v1235 = vpop.f32.mrf.mxu0
    %v1236 = vadd.f32 0.0, %v1235
    %v1237 = vpop.f32.mrf.mxu0
    %1238 = vdwg.mxu0
    %v1240 = vsel %vm119, %v971, 0
    %v1243 = vsel %vm144, %v475, 0
    %1245 = vmatpush.bf16.msra.mxu0 0
    %1246 = vmatpush.bf16.msra.mxu0 0
    %1247 = vmatpush.bf16.msra.mxu0 0
    %1248 = vmatpush.bf16.msra.mxu0 0
    %1249 = vmatpush.bf16.msra.mxu0 0
    %1250 = vmatpush.bf16.msra.mxu0 0
    %1251 = vmatpush.bf16.msra.mxu0 0
    %1252 = vmatpush.bf16.msra.mxu0 %v1243
    %1253 = vmatmul.bf16.gmra.mxu0 %v1240
    %v1254 = vpop.f32.mrf.mxu0
    %v1255 = vadd.f32 0.0, %v1254
    %v1256 = vpop.f32.mrf.mxu0
    %1257 = vdwg.mxu0
    %v1259 = vsel %vm119, %v972, 0
    %v1262 = vsel %vm144, %v476, 0
    %1264 = vmatpush.bf16.msra.mxu0 0
    %1265 = vmatpush.bf16.msra.mxu0 0
    %1266 = vmatpush.bf16.msra.mxu0 0
    %1267 = vmatpush.bf16.msra.mxu0 0
    %1268 = vmatpush.bf16.msra.mxu0 0
    %1269 = vmatpush.bf16.msra.mxu0 0
    %1270 = vmatpush.bf16.msra.mxu0 0
    %1271 = vmatpush.bf16.msra.mxu0 %v1262
    %1272 = vmatmul.bf16.gmra.mxu0 %v1259
    %v1273 = vpop.f32.mrf.mxu0
    %v1274 = vadd.f32 0.0, %v1273
    %v1275 = vpop.f32.mrf.mxu0
    %1276 = vdwg.mxu0
    %v1277 = vpack.c.bf16 %v989, %v989
    %v1278 = vpack.c.bf16 %v1008, %v1008
    %v1279 = vpack.c.bf16 %v1027, %v1027
    %v1280 = vpack.c.bf16 %v1046, %v1046
    %v1281 = vpack.c.bf16 %v1065, %v1065
    %v1282 = vpack.c.bf16 %v1084, %v1084
    %v1283 = vpack.c.bf16 %v1103, %v1103
    %v1284 = vpack.c.bf16 %v1122, %v1122
    %v1285 = vpack.c.bf16 %v1141, %v1141
    %v1286 = vpack.c.bf16 %v1160, %v1160
    %v1287 = vpack.c.bf16 %v1179, %v1179
    %v1288 = vpack.c.bf16 %v1198, %v1198
    %v1289 = vpack.c.bf16 %v1217, %v1217
    %v1290 = vpack.c.bf16 %v1236, %v1236
    %v1291 = vpack.c.bf16 %v1255, %v1255
    %v1292 = vpack.c.bf16 %v1274, %v1274
    %v1293 = vld [vmem:[%s3] sm:$0xf]
    %v1294 = vld [vmem:[%s3 + $0x4] sm:$0xf]
    %v1295 = vld [vmem:[%s3 + $0x8] sm:$0xf]
    %v1296 = vld [vmem:[%s3 + $0xc] sm:$0xf]
    %v1297 = vld [vmem:[%s3 + $0x10] sm:$0xf]
    %v1298 = vld [vmem:[%s3 + $0x14] sm:$0xf]
    %v1299 = vld [vmem:[%s3 + $0x18] sm:$0xf]
    %v1300 = vld [vmem:[%s3 + $0x1c] sm:$0xf]
    %v1303 = vunpack.c.l.b16 %v1277
    %v1304 = vunpack.c.l.b16 %v1278
    %v1305 = vpack.c.b16 %v1304, %v1303
    %v1307 = vsel %vm119, %v1305, 0
    %v1310 = vsel %vm144, %v1293, 0
    %1312 = vmatpush.bf16.msra.mxu0 0
    %1313 = vmatpush.bf16.msra.mxu0 0
    %1314 = vmatpush.bf16.msra.mxu0 0
    %1315 = vmatpush.bf16.msra.mxu0 0
    %1316 = vmatpush.bf16.msra.mxu0 0
    %1317 = vmatpush.bf16.msra.mxu0 0
    %1318 = vmatpush.bf16.msra.mxu0 0
    %1319 = vmatpush.bf16.msra.mxu0 %v1310
    %1320 = vmatmul.bf16.gmra.mxu0 %v1307
    %v1321 = vpop.f32.mrf.mxu0
    %v1322 = vadd.f32 0.0, %v1321
    %v1323 = vpop.f32.mrf.mxu0
    %v1324 = vadd.f32 0.0, %v1323
    %1325 = vdwg.mxu0
    %v1328 = vunpack.c.l.b16 %v1279
    %v1329 = vunpack.c.l.b16 %v1280
    %v1330 = vpack.c.b16 %v1329, %v1328
    %v1332 = vsel %vm119, %v1330, 0
    %v1335 = vsel %vm144, %v1294, 0
    %1337 = vmatpush.bf16.msra.mxu0 0
    %1338 = vmatpush.bf16.msra.mxu0 0
    %1339 = vmatpush.bf16.msra.mxu0 0
    %1340 = vmatpush.bf16.msra.mxu0 0
    %1341 = vmatpush.bf16.msra.mxu0 0
    %1342 = vmatpush.bf16.msra.mxu0 0
    %1343 = vmatpush.bf16.msra.mxu0 0
    %1344 = vmatpush.bf16.msra.mxu0 %v1335
    %1345 = vmatmul.bf16.gmra.mxu0 %v1332
    %v1346 = vpop.f32.mrf.mxu0
    %v1347 = vadd.f32 0.0, %v1346
    %v1348 = vpop.f32.mrf.mxu0
    %v1349 = vadd.f32 0.0, %v1348
    %1350 = vdwg.mxu0
    %v1353 = vunpack.c.l.b16 %v1281
    %v1354 = vunpack.c.l.b16 %v1282
    %v1355 = vpack.c.b16 %v1354, %v1353
    %v1357 = vsel %vm119, %v1355, 0
    %v1360 = vsel %vm144, %v1295, 0
    %1362 = vmatpush.bf16.msra.mxu0 0
    %1363 = vmatpush.bf16.msra.mxu0 0
    %1364 = vmatpush.bf16.msra.mxu0 0
    %1365 = vmatpush.bf16.msra.mxu0 0
    %1366 = vmatpush.bf16.msra.mxu0 0
    %1367 = vmatpush.bf16.msra.mxu0 0
    %1368 = vmatpush.bf16.msra.mxu0 0
    %1369 = vmatpush.bf16.msra.mxu0 %v1360
    %1370 = vmatmul.bf16.gmra.mxu0 %v1357
    %v1371 = vpop.f32.mrf.mxu0
    %v1372 = vadd.f32 0.0, %v1371
    %v1373 = vpop.f32.mrf.mxu0
    %v1374 = vadd.f32 0.0, %v1373
    %1375 = vdwg.mxu0
    %v1378 = vunpack.c.l.b16 %v1283
    %v1379 = vunpack.c.l.b16 %v1284
    %v1380 = vpack.c.b16 %v1379, %v1378
    %v1382 = vsel %vm119, %v1380, 0
    %v1385 = vsel %vm144, %v1296, 0
    %1387 = vmatpush.bf16.msra.mxu0 0
    %1388 = vmatpush.bf16.msra.mxu0 0
    %1389 = vmatpush.bf16.msra.mxu0 0
    %1390 = vmatpush.bf16.msra.mxu0 0
    %1391 = vmatpush.bf16.msra.mxu0 0
    %1392 = vmatpush.bf16.msra.mxu0 0
    %1393 = vmatpush.bf16.msra.mxu0 0
    %1394 = vmatpush.bf16.msra.mxu0 %v1385
    %1395 = vmatmul.bf16.gmra.mxu0 %v1382
    %v1396 = vpop.f32.mrf.mxu0
    %v1397 = vadd.f32 0.0, %v1396
    %v1398 = vpop.f32.mrf.mxu0
    %v1399 = vadd.f32 0.0, %v1398
    %1400 = vdwg.mxu0
    %v1403 = vunpack.c.l.b16 %v1285
    %v1404 = vunpack.c.l.b16 %v1286
    %v1405 = vpack.c.b16 %v1404, %v1403
    %v1407 = vsel %vm119, %v1405, 0
    %v1410 = vsel %vm144, %v1297, 0
    %1412 = vmatpush.bf16.msra.mxu0 0
    %1413 = vmatpush.bf16.msra.mxu0 0
    %1414 = vmatpush.bf16.msra.mxu0 0
    %1415 = vmatpush.bf16.msra.mxu0 0
    %1416 = vmatpush.bf16.msra.mxu0 0
    %1417 = vmatpush.bf16.msra.mxu0 0
    %1418 = vmatpush.bf16.msra.mxu0 0
    %1419 = vmatpush.bf16.msra.mxu0 %v1410
    %1420 = vmatmul.bf16.gmra.mxu0 %v1407
    %v1421 = vpop.f32.mrf.mxu0
    %v1422 = vadd.f32 0.0, %v1421
    %v1423 = vpop.f32.mrf.mxu0
    %v1424 = vadd.f32 0.0, %v1423
    %1425 = vdwg.mxu0
    %v1428 = vunpack.c.l.b16 %v1287
    %v1429 = vunpack.c.l.b16 %v1288
    %v1430 = vpack.c.b16 %v1429, %v1428
    %v1432 = vsel %vm119, %v1430, 0
    %v1435 = vsel %vm144, %v1298, 0
    %1437 = vmatpush.bf16.msra.mxu0 0
    %1438 = vmatpush.bf16.msra.mxu0 0
    %1439 = vmatpush.bf16.msra.mxu0 0
    %1440 = vmatpush.bf16.msra.mxu0 0
    %1441 = vmatpush.bf16.msra.mxu0 0
    %1442 = vmatpush.bf16.msra.mxu0 0
    %1443 = vmatpush.bf16.msra.mxu0 0
    %1444 = vmatpush.bf16.msra.mxu0 %v1435
    %1445 = vmatmul.bf16.gmra.mxu0 %v1432
    %v1446 = vpop.f32.mrf.mxu0
    %v1447 = vadd.f32 0.0, %v1446
    %v1448 = vpop.f32.mrf.mxu0
    %v1449 = vadd.f32 0.0, %v1448
    %1450 = vdwg.mxu0
    %v1453 = vunpack.c.l.b16 %v1289
    %v1454 = vunpack.c.l.b16 %v1290
    %v1455 = vpack.c.b16 %v1454, %v1453
    %v1457 = vsel %vm119, %v1455, 0
    %v1460 = vsel %vm144, %v1299, 0
    %1462 = vmatpush.bf16.msra.mxu0 0
    %1463 = vmatpush.bf16.msra.mxu0 0
    %1464 = vmatpush.bf16.msra.mxu0 0
    %1465 = vmatpush.bf16.msra.mxu0 0
    %1466 = vmatpush.bf16.msra.mxu0 0
    %1467 = vmatpush.bf16.msra.mxu0 0
    %1468 = vmatpush.bf16.msra.mxu0 0
    %1469 = vmatpush.bf16.msra.mxu0 %v1460
    %1470 = vmatmul.bf16.gmra.mxu0 %v1457
    %v1471 = vpop.f32.mrf.mxu0
    %v1472 = vadd.f32 0.0, %v1471
    %v1473 = vpop.f32.mrf.mxu0
    %v1474 = vadd.f32 0.0, %v1473
    %1475 = vdwg.mxu0
    %v1478 = vunpack.c.l.b16 %v1291
    %v1479 = vunpack.c.l.b16 %v1292
    %v1480 = vpack.c.b16 %v1479, %v1478
    %v1482 = vsel %vm119, %v1480, 0
    %v1485 = vsel %vm144, %v1300, 0
    %1487 = vmatpush.bf16.msra.mxu0 0
    %1488 = vmatpush.bf16.msra.mxu0 0
    %1489 = vmatpush.bf16.msra.mxu0 0
    %1490 = vmatpush.bf16.msra.mxu0 0
    %1491 = vmatpush.bf16.msra.mxu0 0
    %1492 = vmatpush.bf16.msra.mxu0 0
    %1493 = vmatpush.bf16.msra.mxu0 0
    %1494 = vmatpush.bf16.msra.mxu0 %v1485
    %1495 = vmatmul.bf16.gmra.mxu0 %v1482
    %v1496 = vpop.f32.mrf.mxu0
    %v1497 = vadd.f32 0.0, %v1496
    %v1498 = vpop.f32.mrf.mxu0
    %v1499 = vadd.f32 0.0, %v1498
    %1500 = vdwg.mxu0
    %vm1501 = vcmask 523264
    %v1502 = vsel %vm1501, %v1322, 0.0
    %v1503 = vsel %vm1501, %v1347, 0.0
    %v1504 = vadd.f32 %v1502, %v1503
    %v1505 = vsel %vm1501, %v1372, 0.0
    %v1506 = vadd.f32 %v1504, %v1505
    %v1507 = vsel %vm1501, %v1397, 0.0
    %v1508 = vadd.f32 %v1506, %v1507
    %v1509 = vsel %vm1501, %v1422, 0.0
    %v1510 = vadd.f32 %v1508, %v1509
    %v1511 = vsel %vm1501, %v1447, 0.0
    %v1512 = vadd.f32 %v1510, %v1511
    %v1513 = vsel %vm1501, %v1472, 0.0
    %v1514 = vadd.f32 %v1512, %v1513
    %v1515 = vsel %vm1501, %v1497, 0.0
    %v1516 = vadd.f32 %v1514, %v1515
    %v1517 = vsel %vm1501, %v1324, 0.0
    %v1518 = vsel %vm1501, %v1349, 0.0
    %v1519 = vadd.f32 %v1517, %v1518
    %v1520 = vsel %vm1501, %v1374, 0.0
    %v1521 = vadd.f32 %v1519, %v1520
    %v1522 = vsel %vm1501, %v1399, 0.0
    %v1523 = vadd.f32 %v1521, %v1522
    %v1524 = vsel %vm1501, %v1424, 0.0
    %v1525 = vadd.f32 %v1523, %v1524
    %v1526 = vsel %vm1501, %v1449, 0.0
    %v1527 = vadd.f32 %v1525, %v1526
    %v1528 = vsel %vm1501, %v1474, 0.0
    %v1529 = vadd.f32 %v1527, %v1528
    %v1530 = vsel %vm1501, %v1499, 0.0
    %v1531 = vadd.f32 %v1529, %v1530
    %v1532 = vld [vmem:[%s6] sm:$0xff]
    %v1533 = vld [vmem:[%s6 + $0x8] sm:$0xff]
    %v1534 = vperm.slane %v1532, 0
    %v1535 = vadd.f32 %v1516, %v1534
    %v1536 = vadd.f32 %v1531, %v1534
    %v1537 = vld [vmem:[%s1] sm:$0xff]
    %v1538 = vld [vmem:[%s1 + $0x8] sm:$0xff]
    %v1539 = vadd.f32 %v1535, %v1537
    %v1540 = vadd.f32 %v1536, %v1538
    %v1541 = vsel %vm1501, %v1539, 0.0
    %1542 = vadd.xlane.f32.xlu0 %v1541
    %v1543 = vpop.xlane.xlu0 %1542
    %v1544 = vsel %vm1501, %v1540, 0.0
    %1545 = vadd.xlane.f32.xlu0 %v1544
    %v1546 = vpop.xlane.xlu0 %1545
    %v1547 = vrcp.pop 64.0
    %v1548 = vmul.f32 64.0, %v1547
    %v1549 = vsub.f32 1.0, %v1548
    %v1550 = vmul.f32 %v1547, %v1549
    %v1551 = vadd.f32 %v1547, %v1550
    %vm1552 = vweird.f32 %v1547
    %v1553 = vsel %vm1552, %v1547, %v1551
    %v1554 = vmul.f32 %v1543, %v1553
    %v1555 = vmul.f32 %v1546, %v1553
    %v1556 = vsub.f32 %v1539, %v1554
    %v1557 = vsub.f32 %v1540, %v1555
    %v1558 = vmul.f32 %v1556, %v1556
    %v1559 = vmul.f32 %v1557, %v1557
    %v1560 = vsel %vm1501, %v1558, 0.0
    %1561 = vadd.xlane.f32.xlu0 %v1560
    %v1562 = vpop.xlane.xlu0 %1561
    %v1563 = vsel %vm1501, %v1559, 0.0
    %1564 = vadd.xlane.f32.xlu0 %v1563
    %v1565 = vpop.xlane.xlu0 %1564
    %v1566 = vmul.f32 %v1562, %v1553
    %v1567 = vmul.f32 %v1565, %v1553
    %v1568 = vadd.f32 %v1566, 1e-05
    %v1569 = vadd.f32 %v1567, 1e-05
    %v1570 = vrsqrt.pop %v1568
    %v1571 = vmul.f32 %v1570, %v1568
    %v1572 = vmul.f32 %v1571, %v1570
    %v1573 = vmul.f32 0.5, %v1572
    %v1574 = vsub.f32 1.5, %v1573
    %v1575 = vmul.f32 %v1570, %v1574
    %vm1576 = vweird.f32 %v1568
    %vm1577 = vweird.f32 %v1570
    %vm1578 = vmor %vm1576, %vm1577
    %v1579 = vsel %vm1578, %v1570, %v1575
    %v1580 = vrsqrt.pop %v1569
    %v1581 = vmul.f32 %v1580, %v1569
    %v1582 = vmul.f32 %v1581, %v1580
    %v1583 = vmul.f32 0.5, %v1582
    %v1584 = vsub.f32 1.5, %v1583
    %v1585 = vmul.f32 %v1580, %v1584
    %vm1586 = vweird.f32 %v1569
    %vm1587 = vweird.f32 %v1580
    %vm1588 = vmor %vm1586, %vm1587
    %v1589 = vsel %vm1588, %v1580, %v1585
    %v1590 = vmul.f32 %v1556, %v1579
    %v1591 = vmul.f32 %v1557, %v1589
    %v1592 = vperm.slane %v1532, 3
    %v1593 = vmul.f32 %v1590, %v1592
    %v1594 = vmul.f32 %v1591, %v1592
    %v1595 = vperm.slane %v1532, 4
    %v1596 = vadd.f32 %v1593, %v1595
    %v1597 = vadd.f32 %v1594, %v1595
    %v1598 = vpack.c.bf16 %v1597, %v1596
    %v1599 = vld [vmem:[%s4] sm:$0xff]
    %v1600 = vld [vmem:[%s4 + $0x8] sm:$0xff]
    %v1601 = vld [vmem:[%s4 + $0x10] sm:$0xff]
    %v1602 = vld [vmem:[%s4 + $0x18] sm:$0xff]
    %v1603 = vld [vmem:[%s4 + $0x20] sm:$0xff]
    %v1604 = vld [vmem:[%s4 + $0x28] sm:$0xff]
    %v1605 = vld [vmem:[%s4 + $0x30] sm:$0xff]
    %v1606 = vld [vmem:[%s4 + $0x38] sm:$0xff]
    %v1607 = vperm.slane %v1532, 1
    %v1608 = vperm.slane %v1533, 1
    %v1617 = vunpack.c.l.b16 %v1599
    %v1618 = vunpack.c.h.b16 %v1599
    %v1619 = vunpack.c.l.b16 %v1600
    %v1620 = vunpack.c.h.b16 %v1600
    %v1621 = vunpack.c.l.b16 %v1601
    %v1622 = vunpack.c.h.b16 %v1601
    %v1623 = vunpack.c.l.b16 %v1602
    %v1624 = vunpack.c.h.b16 %v1602
    %v1625 = vunpack.c.l.b16 %v1603
    %v1626 = vunpack.c.h.b16 %v1603
    %v1627 = vunpack.c.l.b16 %v1604
    %v1628 = vunpack.c.h.b16 %v1604
    %v1629 = vunpack.c.l.b16 %v1605
    %v1630 = vunpack.c.h.b16 %v1605
    %v1631 = vunpack.c.l.b16 %v1606
    %v1632 = vunpack.c.h.b16 %v1606
    %v1633 = vpack.c.b16 %v1619, %v1617
    %v1634 = vpack.c.b16 %v1620, %v1618
    %v1635 = vpack.c.b16 %v1623, %v1621
    %v1636 = vpack.c.b16 %v1624, %v1622
    %v1637 = vpack.c.b16 %v1627, %v1625
    %v1638 = vpack.c.b16 %v1628, %v1626
    %v1639 = vpack.c.b16 %v1631, %v1629
    %v1640 = vpack.c.b16 %v1632, %v1630
    %v1650 = vsel %vm1501, %v1598, 0
    %1652 = vmatpush.bf16.msra.mxu0 0
    %1653 = vmatpush.bf16.msra.mxu0 0
    %1654 = vmatpush.bf16.msra.mxu0 0
    %1655 = vmatpush.bf16.msra.mxu0 0
    %1656 = vmatpush.bf16.msra.mxu0 %v1639
    %1657 = vmatpush.bf16.msra.mxu0 %v1637
    %1658 = vmatpush.bf16.msra.mxu0 %v1635
    %1659 = vmatpush.bf16.msra.mxu0 %v1633
    %1660 = vmatmul.bf16.gmra.mxu0 %v1650
    %v1661 = vpop.f32.mrf.mxu0
    %v1662 = vadd.f32 %v1607, %v1661
    %v1663 = vpop.f32.mrf.mxu0
    %v1664 = vadd.f32 %v1607, %v1663
    %1665 = vdwg.mxu0
    %1666 = vmatpush.bf16.msra.mxu0 0
    %1667 = vmatpush.bf16.msra.mxu0 0
    %1668 = vmatpush.bf16.msra.mxu0 0
    %1669 = vmatpush.bf16.msra.mxu0 0
    %1670 = vmatpush.bf16.msra.mxu0 %v1640
    %1671 = vmatpush.bf16.msra.mxu0 %v1638
    %1672 = vmatpush.bf16.msra.mxu0 %v1636
    %1673 = vmatpush.bf16.msra.mxu0 %v1634
    %1674 = vmatmul.bf16.gmra.mxu0 %v1650
    %v1675 = vpop.f32.mrf.mxu0
    %v1676 = vadd.f32 %v1608, %v1675
    %v1677 = vpop.f32.mrf.mxu0
    %v1678 = vadd.f32 %v1608, %v1677
    %1679 = vdwg.mxu0
    %v1680 = vmax.f32 %v1662, 0.0
    %v1681 = vmax.f32 %v1676, 0.0
    %v1682 = vmax.f32 %v1664, 0.0
    %v1683 = vmax.f32 %v1678, 0.0
    %v1684 = vpack.c.bf16 %v1682, %v1680
    %v1685 = vpack.c.bf16 %v1683, %v1681
    %v1686 = vld [vmem:[%s5] sm:$0xf]
    %v1687 = vld [vmem:[%s5 + $0x4] sm:$0xf]
    %v1688 = vld [vmem:[%s5 + $0x8] sm:$0xf]
    %v1689 = vld [vmem:[%s5 + $0xc] sm:$0xf]
    %v1690 = vld [vmem:[%s5 + $0x10] sm:$0xf]
    %v1691 = vld [vmem:[%s5 + $0x14] sm:$0xf]
    %v1692 = vld [vmem:[%s5 + $0x18] sm:$0xf]
    %v1693 = vld [vmem:[%s5 + $0x1c] sm:$0xf]
    %v1694 = vld [vmem:[%s5 + $0x20] sm:$0xf]
    %v1695 = vld [vmem:[%s5 + $0x24] sm:$0xf]
    %v1696 = vld [vmem:[%s5 + $0x28] sm:$0xf]
    %v1697 = vld [vmem:[%s5 + $0x2c] sm:$0xf]
    %v1698 = vld [vmem:[%s5 + $0x30] sm:$0xf]
    %v1699 = vld [vmem:[%s5 + $0x34] sm:$0xf]
    %v1700 = vld [vmem:[%s5 + $0x38] sm:$0xf]
    %v1701 = vld [vmem:[%s5 + $0x3c] sm:$0xf]
    %v1702 = vld [vmem:[%s5 + $0x40] sm:$0xf]
    %v1703 = vld [vmem:[%s5 + $0x44] sm:$0xf]
    %v1704 = vld [vmem:[%s5 + $0x48] sm:$0xf]
    %v1705 = vld [vmem:[%s5 + $0x4c] sm:$0xf]
    %v1706 = vld [vmem:[%s5 + $0x50] sm:$0xf]
    %v1707 = vld [vmem:[%s5 + $0x54] sm:$0xf]
    %v1708 = vld [vmem:[%s5 + $0x58] sm:$0xf]
    %v1709 = vld [vmem:[%s5 + $0x5c] sm:$0xf]
    %v1710 = vld [vmem:[%s5 + $0x60] sm:$0xf]
    %v1711 = vld [vmem:[%s5 + $0x64] sm:$0xf]
    %v1712 = vld [vmem:[%s5 + $0x68] sm:$0xf]
    %v1713 = vld [vmem:[%s5 + $0x6c] sm:$0xf]
    %v1714 = vld [vmem:[%s5 + $0x70] sm:$0xf]
    %v1715 = vld [vmem:[%s5 + $0x74] sm:$0xf]
    %v1716 = vld [vmem:[%s5 + $0x78] sm:$0xf]
    %v1717 = vld [vmem:[%s5 + $0x7c] sm:$0xf]
    %v1718 = vperm.slane %v1532, 2
    %v1751 = vunpack.c.l.b16 %v1686
    %v1752 = vunpack.c.l.b16 %v1687
    %v1753 = vunpack.c.l.b16 %v1688
    %v1754 = vunpack.c.l.b16 %v1689
    %v1755 = vunpack.c.l.b16 %v1690
    %v1756 = vunpack.c.l.b16 %v1691
    %v1757 = vunpack.c.l.b16 %v1692
    %v1758 = vunpack.c.l.b16 %v1693
    %v1759 = vunpack.c.l.b16 %v1694
    %v1760 = vunpack.c.l.b16 %v1695
    %v1761 = vunpack.c.l.b16 %v1696
    %v1762 = vunpack.c.l.b16 %v1697
    %v1763 = vunpack.c.l.b16 %v1698
    %v1764 = vunpack.c.l.b16 %v1699
    %v1765 = vunpack.c.l.b16 %v1700
    %v1766 = vunpack.c.l.b16 %v1701
    %v1767 = vunpack.c.l.b16 %v1702
    %v1768 = vunpack.c.l.b16 %v1703
    %v1769 = vunpack.c.l.b16 %v1704
    %v1770 = vunpack.c.l.b16 %v1705
    %v1771 = vunpack.c.l.b16 %v1706
    %v1772 = vunpack.c.l.b16 %v1707
    %v1773 = vunpack.c.l.b16 %v1708
    %v1774 = vunpack.c.l.b16 %v1709
    %v1775 = vunpack.c.l.b16 %v1710
    %v1776 = vunpack.c.l.b16 %v1711
    %v1777 = vunpack.c.l.b16 %v1712
    %v1778 = vunpack.c.l.b16 %v1713
    %v1779 = vunpack.c.l.b16 %v1714
    %v1780 = vunpack.c.l.b16 %v1715
    %v1781 = vunpack.c.l.b16 %v1716
    %v1782 = vunpack.c.l.b16 %v1717
    %v1783 = vpack.c.b16 %v1752, %v1751
    %v1784 = vpack.c.b16 %v1754, %v1753
    %v1785 = vpack.c.b16 %v1756, %v1755
    %v1786 = vpack.c.b16 %v1758, %v1757
    %v1787 = vpack.c.b16 %v1760, %v1759
    %v1788 = vpack.c.b16 %v1762, %v1761
    %v1789 = vpack.c.b16 %v1764, %v1763
    %v1790 = vpack.c.b16 %v1766, %v1765
    %v1791 = vpack.c.b16 %v1768, %v1767
    %v1792 = vpack.c.b16 %v1770, %v1769
    %v1793 = vpack.c.b16 %v1772, %v1771
    %v1794 = vpack.c.b16 %v1774, %v1773
    %v1795 = vpack.c.b16 %v1776, %v1775
    %v1796 = vpack.c.b16 %v1778, %v1777
    %v1797 = vpack.c.b16 %v1780, %v1779
    %v1798 = vpack.c.b16 %v1782, %v1781
    %1815 = vmatpush.bf16.msra.mxu0 %v1790
    %1816 = vmatpush.bf16.msra.mxu0 %v1789
    %1817 = vmatpush.bf16.msra.mxu0 %v1788
    %1818 = vmatpush.bf16.msra.mxu0 %v1787
    %1819 = vmatpush.bf16.msra.mxu0 %v1786
    %1820 = vmatpush.bf16.msra.mxu0 %v1785
    %1821 = vmatpush.bf16.msra.mxu0 %v1784
    %1822 = vmatpush.bf16.msra.mxu0 %v1783
    %1823 = vmatmul.bf16.gmra.mxu0 %v1684
    %v1824 = vpop.f32.mrf.mxu0
    %v1825 = vadd.f32 %v1718, %v1824
    %v1826 = vpop.f32.mrf.mxu0
    %v1827 = vadd.f32 %v1718, %v1826
    %1828 = vdwg.mxu0
    %1829 = vmatpush.bf16.msra.mxu0 %v1798
    %1830 = vmatpush.bf16.msra.mxu0 %v1797
    %1831 = vmatpush.bf16.msra.mxu0 %v1796
    %1832 = vmatpush.bf16.msra.mxu0 %v1795
    %1833 = vmatpush.bf16.msra.mxu0 %v1794
    %1834 = vmatpush.bf16.msra.mxu0 %v1793
    %1835 = vmatpush.bf16.msra.mxu0 %v1792
    %1836 = vmatpush.bf16.msra.mxu0 %v1791
    %1837 = vmatmul.bf16.gmra.mxu0 %v1685
    %v1838 = vpop.f32.mrf.mxu0
    %v1839 = vadd.f32 %v1825, %v1838
    %v1840 = vpop.f32.mrf.mxu0
    %v1841 = vadd.f32 %v1827, %v1840
    %1842 = vdwg.mxu0
    %v1843 = vadd.f32 %v1839, %v1596
    %v1844 = vadd.f32 %v1841, %v1597
    %v1845 = vsel %vm1501, %v1843, 0.0
    %1846 = vadd.xlane.f32.xlu0 %v1845
    %v1847 = vpop.xlane.xlu0 %1846
    %v1848 = vsel %vm1501, %v1844, 0.0
    %1849 = vadd.xlane.f32.xlu0 %v1848
    %v1850 = vpop.xlane.xlu0 %1849
    %v1851 = vmul.f32 %v1847, %v1553
    %v1852 = vmul.f32 %v1850, %v1553
    %v1853 = vsub.f32 %v1843, %v1851
    %v1854 = vsub.f32 %v1844, %v1852
    %v1855 = vmul.f32 %v1853, %v1853
    %v1856 = vmul.f32 %v1854, %v1854
    %v1857 = vsel %vm1501, %v1855, 0.0
    %1858 = vadd.xlane.f32.xlu0 %v1857
    %v1859 = vpop.xlane.xlu0 %1858
    %v1860 = vsel %vm1501, %v1856, 0.0
    %1861 = vadd.xlane.f32.xlu0 %v1860
    %v1862 = vpop.xlane.xlu0 %1861
    %v1863 = vmul.f32 %v1859, %v1553
    %v1864 = vmul.f32 %v1862, %v1553
    %v1865 = vadd.f32 %v1863, 1e-05
    %v1866 = vadd.f32 %v1864, 1e-05
    %v1867 = vrsqrt.pop %v1865
    %v1868 = vmul.f32 %v1867, %v1865
    %v1869 = vmul.f32 %v1868, %v1867
    %v1870 = vmul.f32 0.5, %v1869
    %v1871 = vsub.f32 1.5, %v1870
    %v1872 = vmul.f32 %v1867, %v1871
    %vm1873 = vweird.f32 %v1865
    %vm1874 = vweird.f32 %v1867
    %vm1875 = vmor %vm1873, %vm1874
    %v1876 = vsel %vm1875, %v1867, %v1872
    %v1877 = vrsqrt.pop %v1866
    %v1878 = vmul.f32 %v1877, %v1866
    %v1879 = vmul.f32 %v1878, %v1877
    %v1880 = vmul.f32 0.5, %v1879
    %v1881 = vsub.f32 1.5, %v1880
    %v1882 = vmul.f32 %v1877, %v1881
    %vm1883 = vweird.f32 %v1866
    %vm1884 = vweird.f32 %v1877
    %vm1885 = vmor %vm1883, %vm1884
    %v1886 = vsel %vm1885, %v1877, %v1882
    %v1887 = vmul.f32 %v1853, %v1876
    %v1888 = vmul.f32 %v1854, %v1886
    %v1889 = vperm.slane %v1532, 5
    %v1890 = vmul.f32 %v1887, %v1889
    %v1891 = vmul.f32 %v1888, %v1889
    %v1892 = vperm.slane %v1532, 6
    %v1893 = vadd.f32 %v1890, %v1892
    %v1894 = vadd.f32 %v1891, %v1892
    %1895 = vst.msk [vmem:[#allocation2] sm:$0xff] %vm1501, %v1893
    %1896 = vst.msk [vmem:[#allocation2 + $0x8] sm:$0xff] %vm1501, %v1894
    // Predicated region
    $region30: #{_transformer_block_fn.1} parent=1 // pred_check
      _
    $region31: #{_transformer_block_fn.1} parent=1 // pred_check_branch
      %1898 = sbr.rel (0) target = $region33
    $region32: #{_transformer_block_fn.1} parent=1 // pred_region
      %1900 = vsyncadd [#allocation3], 0
      %s1901 = sshll.u32 [#allocation2], 4
      %s1902 = int_to_ptr.vmem [resolvable:$true] %s1901
      %s1903 = sshll.u32 %s7, 4
      %s1904 = int_to_ptr.hbm [resolvable:$true] %s1903
      %1909 = dma.vmem_to_hbm [thread:$0]  %s1902, 256, %s1904, [#allocation3], 128, 128, 8
    $region33: #{_transformer_block_fn.1} parent=1 // pred_fallthru
      _
    // Predicated region
    $region34: #{_transformer_block_fn.1} parent=1 // pred_check
      _
    $region35: #{_transformer_block_fn.1} parent=1 // pred_check_branch
      %1911 = sbr.rel (0) target = $region37
    $region36: #{_transformer_block_fn.1} parent=1 // pred_region
      %1913 = dma.done [#allocation3], 256
    $region37: #{_transformer_block_fn.1} parent=1 // pred_fallthru
      _
    %1914 = vsyncpa [#allocation3], 1

</llo_original>
